<compile_context>
chip_gen: v6e
topology: v6e:2x2x1
jax: 0.10.0
libtpu: 0.0.40
codegen_flags: <defaults>
</compile_context>

<pallas_src>
import functools

import jax
import jax.numpy as jnp
import numpy as np
from jax.experimental import pallas as pl
from jax.experimental.pallas import tpu as pltpu

LANE = 128
SUBLANE = 8


def _round_up(x, m):
    return (x + m - 1) // m * m


def _temporal_block_kernel(*refs, dilation, K, pad, H, TL, has_downsample):
    """One (batch, L-tile) per grid step.

    halo_ref : (H, Cin_p)        last H rows before this tile (zeros for tile 0)
    x_ref    : (TL, Cin_p)       current tile of the input (bf16)
    w1_ref   : (K*Cin_p, Cout_p) conv1 weight, tap-k rows at [k*Cin_p:(k+1)*Cin_p]
    w2_ref   : (K*Cout_p, Cout_p)
    wd_ref   : (Cin_p, Cout_p)   1x1 downsample (only when has_downsample)
    b*_ref   : (1, Cout_p)       f32 biases
    o_ref    : (TL, Cout_p)      f32 output tile
    xcol_ref : (TL+pad, K*Cin_p) bf16 im2col scratch for conv1
    h1col_ref: (TL, K*Cout_p)    bf16 im2col scratch for conv2
    """
    if has_downsample:
        (halo_ref, x_ref, w1_ref, b1_ref, w2_ref, b2_ref, wd_ref, bd_ref,
         o_ref, xcol_ref, h1col_ref) = refs
    else:
        (halo_ref, x_ref, w1_ref, b1_ref, w2_ref, b2_ref,
         o_ref, xcol_ref, h1col_ref) = refs
        wd_ref = bd_ref = None

    Cin_p = x_ref.shape[-1]
    Cout_p = o_ref.shape[-1]
    TLp = TL + pad          # conv1 is evaluated on [tile_start - pad, tile_end)

    # ---- conv1 im2col: tap k of output-row r reads input time (t*TL - pad + r) - (K-1-k)*d.
    # In "halo ++ tile" coordinates that is row (H - 2*pad) + k*d + r; the first
    # hl = 2*pad - k*d rows come from the halo, the rest from the tile itself.
    for k in range(K):
        hl = 2 * pad - k * dilation
        c0 = k * Cin_p
        if hl > 0:
            xcol_ref[pl.ds(0, hl), pl.ds(c0, Cin_p)] = halo_ref[pl.ds(H - hl, hl), :]
        xcol_ref[pl.ds(hl, TLp - hl), pl.ds(c0, Cin_p)] = x_ref[pl.ds(0, TLp - hl), :]

    # one fat MXU matmul per conv (contraction = K*Cin_p), f32 accumulate
    acc1 = jnp.dot(xcol_ref[...], w1_ref[...], preferred_element_type=jnp.float32)
    h1 = jnp.maximum(acc1 + b1_ref[...], 0.0)

    # Rows of h1 at negative global time must be ZERO for conv2's input (PyTorch
    # zero-pads conv2, it does not see relu(b1)); only the first L-tile has such rows.
    if pad > 0:
        row = jax.lax.broadcasted_iota(jnp.int32, acc1.shape, 0)
        keep = jnp.logical_or(pl.program_id(1) > 0, row >= pad)
        h1 = jnp.where(keep, h1, 0.0)
    h1 = h1.astype(h1col_ref.dtype)

    # ---- conv2 im2col: output row r, tap k reads h1 row r + k*d.
    for k in range(K):
        c0 = k * Cout_p
        h1col_ref[pl.ds(0, TL), pl.ds(c0, Cout_p)] = h1[k * dilation:k * dilation + TL, :]

    acc2 = jnp.dot(h1col_ref[...], w2_ref[...], preferred_element_type=jnp.float32)
    h2 = jnp.maximum(acc2 + b2_ref[...], 0.0)

    # ---- residual branch ----
    x_tile = x_ref[...]
    if has_downsample:
        res = jnp.dot(x_tile, wd_ref[...], preferred_element_type=jnp.float32) + bd_ref[...]
    else:
        res = x_tile.astype(jnp.float32)

    o_ref[...] = jnp.maximum(h2 + res, 0.0).astype(o_ref.dtype)


def temporal_block_forward(x_blc, w1, b1, w2, b2, wd=None, bd=None, *,
                           dilation, tile_l=512):
    """x_blc: (B, L, Cin) f32.  w1: (K, Cin, Cout), w2: (K, Cout, Cout),
    wd: (Cin, Cout) or None.  Returns (B, L, Cout) f32."""
    B, L, Cin = x_blc.shape
    K, _, Cout = w1.shape
    pad = dilation * (K - 1)
    has_downsample = wd is not None

    Cin_p = _round_up(Cin, LANE)
    Cout_p = _round_up(Cout, LANE)

    # halo rows per tile: enough to recompute conv1 over [tile_start - pad, ...)
    H = max(_round_up(2 * pad, SUBLANE), SUBLANE)
    # L-tile size: big tiles amortize per-step overhead; sweep tile_l for large L.
    TL = min(_round_up(tile_l, SUBLANE), _round_up(L, SUBLANE))
    TL = max(TL, H)                       # halo comes from exactly one previous tile
    nL = (L + TL - 1) // TL
    L_pad = nL * TL

    cdt = jnp.bfloat16

    # Single fused XLA op: cast to bf16 + pad channels to 128 lanes + round L up to
    # a multiple of TL.  (No full front-pad copy of x for causality any more.)
    x = jnp.pad(x_blc.astype(cdt), ((0, 0), (0, L_pad - L), (0, Cin_p - Cin)))
    xt = x.reshape(B, nL, TL, Cin_p)
    # halo[b, t] = the H rows of x just before tile t (zeros for the first tile)
    halo = jnp.concatenate(
        [jnp.zeros((B, 1, H, Cin_p), cdt), xt[:, :-1, TL - H:, :]], axis=1)

    def pad_w(w, ci, co, cip, cop):
        return jnp.zeros(w.shape[:-2] + (cip, cop), cdt).at[..., :ci, :co].set(w.astype(cdt))

    w1p = pad_w(w1, Cin, Cout, Cin_p, Cout_p).reshape(K * Cin_p, Cout_p)
    w2p = pad_w(w2, Cout, Cout, Cout_p, Cout_p).reshape(K * Cout_p, Cout_p)
    b1p = jnp.zeros((1, Cout_p), jnp.float32).at[0, :Cout].set(b1)
    b2p = jnp.zeros((1, Cout_p), jnp.float32).at[0, :Cout].set(b2)

    inputs = [halo, x, w1p, b1p, w2p, b2p]
    in_specs = [
        pl.BlockSpec((pl.Squeezed(), pl.Squeezed(), H, Cin_p), lambda b, t: (b, t, 0, 0)),
        pl.BlockSpec((pl.Squeezed(), TL, Cin_p), lambda b, t: (b, t, 0)),
        pl.BlockSpec((K * Cin_p, Cout_p), lambda b, t: (0, 0)),
        pl.BlockSpec((1, Cout_p), lambda b, t: (0, 0)),
        pl.BlockSpec((K * Cout_p, Cout_p), lambda b, t: (0, 0)),
        pl.BlockSpec((1, Cout_p), lambda b, t: (0, 0)),
    ]
    if has_downsample:
        wdp = jnp.zeros((Cin_p, Cout_p), cdt).at[:Cin, :Cout].set(wd.astype(cdt))
        bdp = jnp.zeros((1, Cout_p), jnp.float32).at[0, :Cout].set(bd)
        inputs += [wdp, bdp]
        in_specs += [
            pl.BlockSpec((Cin_p, Cout_p), lambda b, t: (0, 0)),
            pl.BlockSpec((1, Cout_p), lambda b, t: (0, 0)),
        ]

    kernel = functools.partial(_temporal_block_kernel, dilation=dilation, K=K,
                               pad=pad, H=H, TL=TL, has_downsample=has_downsample)

    grid_spec = pltpu.PrefetchScalarGridSpec(
        num_scalar_prefetch=0,
        grid=(B, nL),
        in_specs=in_specs,
        out_specs=pl.BlockSpec((pl.Squeezed(), TL, Cout_p), lambda b, t: (b, t, 0)),
        scratch_shapes=[
            pltpu.VMEM((TL + pad, K * Cin_p), cdt),   # conv1 im2col LHS
            pltpu.VMEM((TL, K * Cout_p), cdt),        # conv2 im2col LHS
        ],
    )

    out = pl.pallas_call(
        kernel,
        out_shape=jax.ShapeDtypeStruct((B, L_pad, Cout_p), jnp.float32),
        grid_spec=grid_spec,
        compiler_params=pltpu.CompilerParams(
            dimension_semantics=("parallel", "parallel")),
    )(*inputs)

    return out[:, :L, :Cout]


# ---------------- parameter setup (deterministic, mirrors __init__) -------------

def weight_norm_reparam(v):
    """PyTorch weight_norm(dim=0): w = g * v / ||v||, g initialized to ||v|| => w == v."""
    norm = jnp.sqrt(jnp.sum(v * v, axis=(1, 2), keepdims=True))
    g = norm
    return g * v / norm


def make_params(key, n_inputs, n_outputs, kernel_size):
    ks = jax.random.split(key, 6)
    v1 = 0.01 * jax.random.normal(ks[0], (n_outputs, n_inputs, kernel_size), jnp.float32)
    v2 = 0.01 * jax.random.normal(ks[1], (n_outputs, n_outputs, kernel_size), jnp.float32)
    W1 = weight_norm_reparam(v1)          # (O, I, K) PyTorch layout
    W2 = weight_norm_reparam(v2)
    B1 = 0.05 * jax.random.normal(ks[2], (n_outputs,), jnp.float32)
    B2 = 0.05 * jax.random.normal(ks[3], (n_outputs,), jnp.float32)
    if n_inputs != n_outputs:
        Wd = 0.01 * jax.random.normal(ks[4], (n_outputs, n_inputs, 1), jnp.float32)
        Bd = 0.05 * jax.random.normal(ks[5], (n_outputs,), jnp.float32)
    else:
        Wd, Bd = None, None
    return W1, B1, W2, B2, Wd, Bd


# ---------------- pure-JAX reference (matches PyTorch conv semantics) ------------

def ref_forward(x_ncl, W1, B1, W2, B2, Wd, Bd, *, dilation, padding):
    def conv(x, W, B):
        y = jax.lax.conv_general_dilated(
            x, W, window_strides=(1,), padding=[(padding, padding)],
            rhs_dilation=(dilation,), dimension_numbers=('NCH', 'OIH', 'NCH'))
        return y + B[None, :, None]

    h = jnp.maximum(conv(x_ncl, W1, B1)[:, :, :-padding], 0.0)
    h = jnp.maximum(conv(h, W2, B2)[:, :, :-padding], 0.0)
    if Wd is not None:
        res = jnp.einsum('ncl,oc->nol', x_ncl, Wd[:, :, 0]) + Bd[None, :, None]
    else:
        res = x_ncl
    return jnp.maximum(h + res, 0.0)


if __name__ == "__main__":
    # small shapes consistent with the module
    B, n_inputs, n_outputs, L = 2, 4, 8, 16
    kernel_size, stride, dilation = 3, 1, 2
    padding = (kernel_size - 1) * dilation
    assert stride == 1  # TCN blocks use stride=1

    key = jax.random.PRNGKey(0)
    kx, kp = jax.random.split(key)
    x_ncl = jax.random.normal(kx, (B, n_inputs, L), jnp.float32)   # PyTorch NCL input
    W1, B1, W2, B2, Wd, Bd = make_params(kp, n_inputs, n_outputs, kernel_size)

    # reshape weights for the kernel: (O, I, K) -> (K, I, O); input NCL -> BLC
    w1_k = jnp.transpose(W1, (2, 1, 0))
    w2_k = jnp.transpose(W2, (2, 1, 0))
    wd_k = None if Wd is None else jnp.transpose(Wd[:, :, 0], (1, 0))
    x_blc = jnp.transpose(x_ncl, (0, 2, 1))

    out_blc = temporal_block_forward(x_blc, w1_k, B1, w2_k, B2, wd_k, Bd,
                                     dilation=dilation)
    out_blc = jax.block_until_ready(out_blc)
    out_ncl = jnp.transpose(out_blc, (0, 2, 1))

    ref = ref_forward(x_ncl, W1, B1, W2, B2, Wd, Bd,
                      dilation=dilation, padding=padding)
    # bf16 matmul inputs (f32 accumulation) -> looser tolerance than pure f32
    np.testing.assert_allclose(np.asarray(out_ncl), np.asarray(ref),
                               rtol=5e-2, atol=5e-3)
    print("KERNEL_OK")
</pallas_src>

<mosaic_0001>
module attributes {stable_mosaic.version = 11 : i64} {
  func.func @_temporal_block_kernel(%arg0: i32, %arg1: i32, %arg2: memref<1x1x8x128xbf16, #tpu.memory_space<vmem>>, %arg3: memref<1x16x128xbf16, #tpu.memory_space<vmem>>, %arg4: memref<384x128xbf16, #tpu.memory_space<vmem>>, %arg5: memref<1x128xf32, #tpu.memory_space<vmem>>, %arg6: memref<384x128xbf16, #tpu.memory_space<vmem>>, %arg7: memref<1x128xf32, #tpu.memory_space<vmem>>, %arg8: memref<128x128xbf16, #tpu.memory_space<vmem>>, %arg9: memref<1x128xf32, #tpu.memory_space<vmem>>, %arg10: memref<1x16x128xf32, #tpu.memory_space<vmem>>, %arg11: memref<20x384xbf16, #tpu.memory_space<vmem>>, %arg12: memref<16x384xbf16, #tpu.memory_space<vmem>>) attributes {dimension_semantics = [#tpu.dimension_semantics<parallel>, #tpu.dimension_semantics<parallel>], iteration_bounds = array<i64: 2, 1>, scalar_prefetch = 0 : i64, scratch_operands = 2 : i64, tpu.core_type = #tpu.core_type<tc>, window_params = [{transform_indices = @transform_0, window_bounds = array<i64: 1, 1, 8, 128>}, {transform_indices = @transform_1, window_bounds = array<i64: 1, 16, 128>}, {pipeline_mode = #tpu.pipeline_mode<synchronous>, transform_indices = @transform_2, window_bounds = array<i64: 384, 128>}, {pipeline_mode = #tpu.pipeline_mode<synchronous>, transform_indices = @transform_3, window_bounds = array<i64: 1, 128>}, {pipeline_mode = #tpu.pipeline_mode<synchronous>, transform_indices = @transform_4, window_bounds = array<i64: 384, 128>}, {pipeline_mode = #tpu.pipeline_mode<synchronous>, transform_indices = @transform_5, window_bounds = array<i64: 1, 128>}, {pipeline_mode = #tpu.pipeline_mode<synchronous>, transform_indices = @transform_6, window_bounds = array<i64: 128, 128>}, {pipeline_mode = #tpu.pipeline_mode<synchronous>, transform_indices = @transform_7, window_bounds = array<i64: 1, 128>}, {transform_indices = @transform_8, window_bounds = array<i64: 1, 16, 128>}]} {
    %c0 = arith.constant 0 : index
    %c0_0 = arith.constant 0 : index
    %c0_1 = arith.constant 0 : index
    %c0_2 = arith.constant 0 : index
    %0 = vector.load %arg2[%c0, %c0_0, %c0_1, %c0_2] : memref<1x1x8x128xbf16, #tpu.memory_space<vmem>>, vector<1x1x8x128xbf16>
    %1 = vector.shape_cast %0 : vector<1x1x8x128xbf16> to vector<8x128xbf16>
    %c0_3 = arith.constant 0 : index
    %c0_4 = arith.constant 0 : index
    %2 = vector.load %arg11[%c0_3, %c0_4] : memref<20x384xbf16, #tpu.memory_space<vmem>>, vector<8x128xbf16>
    tpu.vector_store %arg11[%c0_3, %c0_4], %1 {strides = array<i32>} : memref<20x384xbf16, #tpu.memory_space<vmem>>, vector<8x128xbf16>,
    %c0_5 = arith.constant 0 : index
    %c0_6 = arith.constant 0 : index
    %c0_7 = arith.constant 0 : index
    %3 = vector.load %arg3[%c0_5, %c0_6, %c0_7] : memref<1x16x128xbf16, #tpu.memory_space<vmem>>, vector<1x12x128xbf16>
    %4 = vector.shape_cast %3 : vector<1x12x128xbf16> to vector<12x128xbf16>
    %c8 = arith.constant 8 : index
    %c0_8 = arith.constant 0 : index
    %5 = vector.load %arg11[%c8, %c0_8] : memref<20x384xbf16, #tpu.memory_space<vmem>>, vector<12x128xbf16>
    tpu.vector_store %arg11[%c8, %c0_8], %4 {strides = array<i32>} : memref<20x384xbf16, #tpu.memory_space<vmem>>, vector<12x128xbf16>,
    %c0_9 = arith.constant 0 : index
    %c0_10 = arith.constant 0 : index
    %c2 = arith.constant 2 : index
    %c0_11 = arith.constant 0 : index
    %6 = vector.load %arg2[%c0_9, %c0_10, %c2, %c0_11] : memref<1x1x8x128xbf16, #tpu.memory_space<vmem>>, vector<1x1x6x128xbf16>
    %7 = vector.shape_cast %6 : vector<1x1x6x128xbf16> to vector<6x128xbf16>
    %c0_12 = arith.constant 0 : index
    %c128 = arith.constant 128 : index
    %8 = vector.load %arg11[%c0_12, %c128] : memref<20x384xbf16, #tpu.memory_space<vmem>>, vector<6x128xbf16>
    tpu.vector_store %arg11[%c0_12, %c128], %7 {strides = array<i32>} : memref<20x384xbf16, #tpu.memory_space<vmem>>, vector<6x128xbf16>,
    %c0_13 = arith.constant 0 : index
    %c0_14 = arith.constant 0 : index
    %c0_15 = arith.constant 0 : index
    %9 = vector.load %arg3[%c0_13, %c0_14, %c0_15] : memref<1x16x128xbf16, #tpu.memory_space<vmem>>, vector<1x14x128xbf16>
    %10 = vector.shape_cast %9 : vector<1x14x128xbf16> to vector<14x128xbf16>
    %c6 = arith.constant 6 : index
    %c128_16 = arith.constant 128 : index
    %11 = vector.load %arg11[%c6, %c128_16] : memref<20x384xbf16, #tpu.memory_space<vmem>>, vector<14x128xbf16>
    tpu.vector_store %arg11[%c6, %c128_16], %10 {strides = array<i32>} : memref<20x384xbf16, #tpu.memory_space<vmem>>, vector<14x128xbf16>,
    %c0_17 = arith.constant 0 : index
    %c0_18 = arith.constant 0 : index
    %c4 = arith.constant 4 : index
    %c0_19 = arith.constant 0 : index
    %12 = vector.load %arg2[%c0_17, %c0_18, %c4, %c0_19] : memref<1x1x8x128xbf16, #tpu.memory_space<vmem>>, vector<1x1x4x128xbf16>
    %13 = vector.shape_cast %12 : vector<1x1x4x128xbf16> to vector<4x128xbf16>
    %c0_20 = arith.constant 0 : index
    %c256 = arith.constant 256 : index
    %14 = vector.load %arg11[%c0_20, %c256] : memref<20x384xbf16, #tpu.memory_space<vmem>>, vector<4x128xbf16>
    tpu.vector_store %arg11[%c0_20, %c256], %13 {strides = array<i32>} : memref<20x384xbf16, #tpu.memory_space<vmem>>, vector<4x128xbf16>,
    %c0_21 = arith.constant 0 : index
    %c0_22 = arith.constant 0 : index
    %c0_23 = arith.constant 0 : index
    %15 = vector.load %arg3[%c0_21, %c0_22, %c0_23] : memref<1x16x128xbf16, #tpu.memory_space<vmem>>, vector<1x16x128xbf16>
    %16 = vector.shape_cast %15 : vector<1x16x128xbf16> to vector<16x128xbf16>
    %c4_24 = arith.constant 4 : index
    %c256_25 = arith.constant 256 : index
    %17 = vector.load %arg11[%c4_24, %c256_25] : memref<20x384xbf16, #tpu.memory_space<vmem>>, vector<16x128xbf16>
    tpu.vector_store %arg11[%c4_24, %c256_25], %16 {strides = array<i32>} : memref<20x384xbf16, #tpu.memory_space<vmem>>, vector<16x128xbf16>,
    %c0_26 = arith.constant 0 : index
    %c0_27 = arith.constant 0 : index
    %18 = vector.load %arg11[%c0_26, %c0_27] : memref<20x384xbf16, #tpu.memory_space<vmem>>, vector<20x384xbf16>
    %c0_28 = arith.constant 0 : index
    %c0_29 = arith.constant 0 : index
    %19 = vector.load %arg4[%c0_28, %c0_29] : memref<384x128xbf16, #tpu.memory_space<vmem>>, vector<384x128xbf16>
    %cst = arith.constant dense<0.000000e+00> : vector<20x128xf32>
    %20 = tpu.matmul %18, %19, %cst {dimension_numbers = #tpu.dot_dimension_numbers<[1], [0], [0], [1], [0, 0, 1, 1], [], []>} : vector<20x384xbf16>, vector<384x128xbf16>, vector<20x128xf32> -> vector<20x128xf32>
    %c0_30 = arith.constant 0 : index
    %c0_31 = arith.constant 0 : index
    %21 = vector.load %arg5[%c0_30, %c0_31] : memref<1x128xf32, #tpu.memory_space<vmem>>, vector<1x128xf32>
    %22 = vector.broadcast %21 : vector<1x128xf32> to vector<20x128xf32>
    %23 = arith.addf %20, %22 : vector<20x128xf32>
    %cst_32 = arith.constant 0.000000e+00 : f32
    %24 = vector.broadcast %cst_32 : f32 to vector<20x128xf32>
    %25 = arith.maximumf %23, %24 : vector<20x128xf32>
    %26 = tpu.iota {dimensions = array<i32: 0>} : vector<20x128xi32>
    %c0_i32 = arith.constant 0 : i32
    %27 = arith.cmpi sgt, %arg1, %c0_i32 : i32
    %c4_i32 = arith.constant 4 : i32
    %28 = vector.broadcast %c4_i32 : i32 to vector<20x128xi32>
    %29 = arith.cmpi sge, %26, %28 : vector<20x128xi32>
    %30 = vector.broadcast %27 : i1 to vector<20x128xi1>
    %31 = arith.ori %30, %29 : vector<20x128xi1>
    %cst_33 = arith.constant 0.000000e+00 : f32
    %32 = vector.broadcast %cst_33 : f32 to vector<20x128xf32>
    %33 = arith.select %31, %25, %32 : vector<20x128xi1>, vector<20x128xf32>
    %34 = arith.truncf %33 : vector<20x128xf32> to vector<20x128xbf16>
    %35 = vector.extract_strided_slice %34 {offsets = [0, 0], sizes = [16, 128], strides = [1, 1]} : vector<20x128xbf16> to vector<16x128xbf16>
    %c0_34 = arith.constant 0 : index
    %c0_35 = arith.constant 0 : index
    %36 = vector.load %arg12[%c0_34, %c0_35] : memref<16x384xbf16, #tpu.memory_space<vmem>>, vector<16x128xbf16>
    tpu.vector_store %arg12[%c0_34, %c0_35], %35 {strides = array<i32>} : memref<16x384xbf16, #tpu.memory_space<vmem>>, vector<16x128xbf16>,
    %37 = vector.extract_strided_slice %34 {offsets = [2, 0], sizes = [16, 128], strides = [1, 1]} : vector<20x128xbf16> to vector<16x128xbf16>
    %c0_36 = arith.constant 0 : index
    %c128_37 = arith.constant 128 : index
    %38 = vector.load %arg12[%c0_36, %c128_37] : memref<16x384xbf16, #tpu.memory_space<vmem>>, vector<16x128xbf16>
    tpu.vector_store %arg12[%c0_36, %c128_37], %37 {strides = array<i32>} : memref<16x384xbf16, #tpu.memory_space<vmem>>, vector<16x128xbf16>,
    %39 = vector.extract_strided_slice %34 {offsets = [4, 0], sizes = [16, 128], strides = [1, 1]} : vector<20x128xbf16> to vector<16x128xbf16>
    %c0_38 = arith.constant 0 : index
    %c256_39 = arith.constant 256 : index
    %40 = vector.load %arg12[%c0_38, %c256_39] : memref<16x384xbf16, #tpu.memory_space<vmem>>, vector<16x128xbf16>
    tpu.vector_store %arg12[%c0_38, %c256_39], %39 {strides = array<i32>} : memref<16x384xbf16, #tpu.memory_space<vmem>>, vector<16x128xbf16>,
    %c0_40 = arith.constant 0 : index
    %c0_41 = arith.constant 0 : index
    %41 = vector.load %arg12[%c0_40, %c0_41] : memref<16x384xbf16, #tpu.memory_space<vmem>>, vector<16x384xbf16>
    %c0_42 = arith.constant 0 : index
    %c0_43 = arith.constant 0 : index
    %42 = vector.load %arg6[%c0_42, %c0_43] : memref<384x128xbf16, #tpu.memory_space<vmem>>, vector<384x128xbf16>
    %cst_44 = arith.constant dense<0.000000e+00> : vector<16x128xf32>
    %43 = tpu.matmul %41, %42, %cst_44 {dimension_numbers = #tpu.dot_dimension_numbers<[1], [0], [0], [1], [0, 0, 1, 1], [], []>} : vector<16x384xbf16>, vector<384x128xbf16>, vector<16x128xf32> -> vector<16x128xf32>
    %c0_45 = arith.constant 0 : index
    %c0_46 = arith.constant 0 : index
    %44 = vector.load %arg7[%c0_45, %c0_46] : memref<1x128xf32, #tpu.memory_space<vmem>>, vector<1x128xf32>
    %45 = vector.broadcast %44 : vector<1x128xf32> to vector<16x128xf32>
    %46 = arith.addf %43, %45 : vector<16x128xf32>
    %cst_47 = arith.constant 0.000000e+00 : f32
    %47 = vector.broadcast %cst_47 : f32 to vector<16x128xf32>
    %48 = arith.maximumf %46, %47 : vector<16x128xf32>
    %c0_48 = arith.constant 0 : index
    %c0_49 = arith.constant 0 : index
    %c0_50 = arith.constant 0 : index
    %49 = vector.load %arg3[%c0_48, %c0_49, %c0_50] : memref<1x16x128xbf16, #tpu.memory_space<vmem>>, vector<1x16x128xbf16>
    %50 = vector.shape_cast %49 : vector<1x16x128xbf16> to vector<16x128xbf16>
    %c0_51 = arith.constant 0 : index
    %c0_52 = arith.constant 0 : index
    %51 = vector.load %arg8[%c0_51, %c0_52] : memref<128x128xbf16, #tpu.memory_space<vmem>>, vector<128x128xbf16>
    %cst_53 = arith.constant dense<0.000000e+00> : vector<16x128xf32>
    %52 = tpu.matmul %50, %51, %cst_53 {dimension_numbers = #tpu.dot_dimension_numbers<[1], [0], [0], [1], [0, 0, 1, 1], [], []>} : vector<16x128xbf16>, vector<128x128xbf16>, vector<16x128xf32> -> vector<16x128xf32>
    %c0_54 = arith.constant 0 : index
    %c0_55 = arith.constant 0 : index
    %53 = vector.load %arg9[%c0_54, %c0_55] : memref<1x128xf32, #tpu.memory_space<vmem>>, vector<1x128xf32>
    %54 = vector.broadcast %53 : vector<1x128xf32> to vector<16x128xf32>
    %55 = arith.addf %52, %54 : vector<16x128xf32>
    %56 = arith.addf %48, %55 : vector<16x128xf32>
    %cst_56 = arith.constant 0.000000e+00 : f32
    %57 = vector.broadcast %cst_56 : f32 to vector<16x128xf32>
    %58 = arith.maximumf %56, %57 : vector<16x128xf32>
    %c0_57 = arith.constant 0 : index
    %c0_58 = arith.constant 0 : index
    %c0_59 = arith.constant 0 : index
    %59 = vector.load %arg10[%c0_57, %c0_58, %c0_59] : memref<1x16x128xf32, #tpu.memory_space<vmem>>, vector<1x16x128xf32>
    %60 = vector.shape_cast %59 : vector<1x16x128xf32> to vector<16x128xf32>
    %61 = vector.shape_cast %58 : vector<16x128xf32> to vector<1x16x128xf32>
    tpu.vector_store %arg10[%c0_57, %c0_58, %c0_59], %61 {strides = array<i32>} : memref<1x16x128xf32, #tpu.memory_space<vmem>>, vector<1x16x128xf32>,
    return
  }
  func.func @transform_0(%arg0: i32, %arg1: i32) -> (i32, i32, i32, i32) {
    %c0_i32 = arith.constant 0 : i32
    %c0_i32_0 = arith.constant 0 : i32
    %c0_i32_1 = arith.constant 0 : i32
    return %arg0, %arg1, %c0_i32, %c0_i32_0 : i32, i32, i32, i32
  }
  func.func @transform_1(%arg0: i32, %arg1: i32) -> (i32, i32, i32) {
    %c0_i32 = arith.constant 0 : i32
    %c0_i32_0 = arith.constant 0 : i32
    return %arg0, %arg1, %c0_i32 : i32, i32, i32
  }
  func.func @transform_2(%arg0: i32, %arg1: i32) -> (i32, i32) {
    %c0_i32 = arith.constant 0 : i32
    %c0_i32_0 = arith.constant 0 : i32
    %c0_i32_1 = arith.constant 0 : i32
    return %c0_i32, %c0_i32_0 : i32, i32
  }
  func.func @transform_3(%arg0: i32, %arg1: i32) -> (i32, i32) {
    %c0_i32 = arith.constant 0 : i32
    %c0_i32_0 = arith.constant 0 : i32
    %c0_i32_1 = arith.constant 0 : i32
    return %c0_i32, %c0_i32_0 : i32, i32
  }
  func.func @transform_4(%arg0: i32, %arg1: i32) -> (i32, i32) {
    %c0_i32 = arith.constant 0 : i32
    %c0_i32_0 = arith.constant 0 : i32
    %c0_i32_1 = arith.constant 0 : i32
    return %c0_i32, %c0_i32_0 : i32, i32
  }
  func.func @transform_5(%arg0: i32, %arg1: i32) -> (i32, i32) {
    %c0_i32 = arith.constant 0 : i32
    %c0_i32_0 = arith.constant 0 : i32
    %c0_i32_1 = arith.constant 0 : i32
    return %c0_i32, %c0_i32_0 : i32, i32
  }
  func.func @transform_6(%arg0: i32, %arg1: i32) -> (i32, i32) {
    %c0_i32 = arith.constant 0 : i32
    %c0_i32_0 = arith.constant 0 : i32
    %c0_i32_1 = arith.constant 0 : i32
    return %c0_i32, %c0_i32_0 : i32, i32
  }
  func.func @transform_7(%arg0: i32, %arg1: i32) -> (i32, i32) {
    %c0_i32 = arith.constant 0 : i32
    %c0_i32_0 = arith.constant 0 : i32
    %c0_i32_1 = arith.constant 0 : i32
    return %c0_i32, %c0_i32_0 : i32, i32
  }
  func.func @transform_8(%arg0: i32, %arg1: i32) -> (i32, i32, i32) {
    %c0_i32 = arith.constant 0 : i32
    %c0_i32_0 = arith.constant 0 : i32
    return %arg0, %arg1, %c0_i32 : i32, i32, i32
  }
}

</mosaic_0001>

<llo_original>
// kernel: tpu_custom_call.1
$region0: #{tpu_custom_call.1}
  #allocation0 [shape = 'u32[]', space=smem, size = 0x4, offset = 0x4, fixed_abs, tag = 'smem constant byte address 0x4 - core index']
  #allocation1 [shape = 'u32[144,128]{1,0:T(1,128)}', space=vmem, size = 0x12000, scoped, tag = 'internal scratch']
  #allocation2 [shape = 'bf16[20,384]{1,0:T(8,128)(2,1)}', space=vmem, size = 0x4800, scoped, tag = 'scratch operand']
  #allocation3 [shape = 'bf16[16,384]{1,0:T(8,128)(2,1)}', space=vmem, size = 0x3000, scoped, tag = 'scratch operand']
  %s0 = inlined_call_operand.hbm [shape: bf16[2,1,8,128], index: 0, kind: input, shape index: {}]
  %s1 = inlined_call_operand.hbm [shape: bf16[2,16,128], index: 1, kind: input, shape index: {}]
  %s2 = inlined_call_operand.hbm [shape: bf16[384,128], index: 2, kind: input, shape index: {}]
  %s3 = inlined_call_operand.vmem [shape: f32[1,128], index: 3, kind: input, shape index: {}]
  %s4 = inlined_call_operand.hbm [shape: bf16[384,128], index: 4, kind: input, shape index: {}]
  %s5 = inlined_call_operand.vmem [shape: f32[1,128], index: 5, kind: input, shape index: {}]
  %s6 = inlined_call_operand.hbm [shape: bf16[128,128], index: 6, kind: input, shape index: {}]
  %s7 = inlined_call_operand.vmem [shape: f32[1,128], index: 7, kind: input, shape index: {}]
  %s8 = inlined_call_operand.hbm [shape: f32[2,16,128], index: 8, kind: output, shape index: {}]
  %s9 = sld [smem:[#allocation0]]
  $region85: #{tpu_custom_call.1} parent=0
    _
  %s11 = ssub.s32 1, %s9
  %s12 = scalar_select 0, %s11, %s9
  $region1: #{tpu_custom_call.1} parent=0
    #allocation4 [shape = 'u8[4096]{0}', space=vmem, size = 0x1000, scoped, tag = 'input window, operand 0']
    #allocation5 [shape = 's32[2]{0}', space=sflag, size = 0x8, scoped, tag = 'scoped memory for tpu_custom_call.1']
    #allocation6 [shape = 's32[2]{0}', space=sflag, size = 0x8, scoped, tag = 'scoped memory for tpu_custom_call.1']
    #allocation7 [shape = 'u8[8192]{0}', space=vmem, size = 0x2000, scoped, tag = 'input window, operand 1']
    #allocation8 [shape = 's32[2]{0}', space=sflag, size = 0x8, scoped, tag = 'scoped memory for tpu_custom_call.1']
    #allocation9 [shape = 'u8[98304]{0}', space=vmem, size = 0x18000, scoped, tag = 'input window, operand 2, single buffered']
    #allocation10 [shape = 'u8[98304]{0}', space=vmem, size = 0x18000, scoped, tag = 'input window, operand 4, single buffered']
    #allocation11 [shape = 's32[1]{0}', space=sflag, size = 0x4, scoped, tag = 'scoped memory for tpu_custom_call.1']
    #allocation12 [shape = 'u8[32768]{0}', space=vmem, size = 0x8000, scoped, tag = 'input window, operand 6, single buffered']
    #allocation13 [shape = 'u8[16384]{0}', space=vmem, size = 0x4000, scoped, tag = 'output window, operand 0']
    %13 = vsyncpa [#allocation5], 0
    %s14 = scalar_lea.sflag [#allocation5], 1
    %15 = vsyncpa %s14, 0
    %16 = vsyncpa [#allocation8], 0
    %s17 = scalar_lea.sflag [#allocation8], 1
    %18 = vsyncpa %s17, 0
    %19 = vsyncpa [#allocation11], 0
    %20 = vsyncpa [#allocation6], 0
    %s21 = scalar_lea.sflag [#allocation6], 1
    %22 = vsyncpa %s21, 0
    loop: start=0, step=1, limit=4
    $region2: #{tpu_custom_call.1} parent=1 // loop_pre_header
      _
    $region3: #{tpu_custom_call.1} parent=1 // loop_header
      %s24 = sphi 0, %s28
      %p25 = scmp.ge.s32.totalorder %s24, 4
      %s31 = sphi 0, %s43
      %s32 = sphi 0, %s39
      %s33 = sphi 0, %s31
      %s34 = sphi 0, %s32
      %s35 = sphi 0, %s33
      %s36 = sphi 0, %s34
      %s48 = sphi 0, %s50
      %s51 = sphi 0, %s48
      %s52 = sphi 0, %s51
      %s68 = sphi 0, %s52
      %s76 = sphi 0, %s78
      %s79 = sphi 0, %s76
      %s80 = sphi 0, %s79
      %s96 = sphi 0, %s80
      %s100 = sphi 0, %s100
      %s102 = sphi 0, %s100
      %s103 = sphi 0, %s102
      %s117 = sphi 0, %s103
      %s121 = sphi 0, %s121
      %s123 = sphi 0, %s121
      %s124 = sphi 0, %s123
      %s138 = sphi 0, %s124
      %s142 = sphi 0, %s142
      %s144 = sphi 0, %s142
      %s145 = sphi 0, %s144
      %s159 = sphi 0, %s145
      %s163 = sphi 0, %s163
      %s165 = sphi 0, %s163
      %s166 = sphi 0, %s165
      %s180 = sphi 0, %s166
      %s184 = sphi 0, %s184
      %s186 = sphi 0, %s184
      %s187 = sphi 0, %s186
      %s201 = sphi 0, %s187
      %s205 = sphi 0, %s205
      %s207 = sphi 0, %s205
      %s208 = sphi 0, %s207
      %s222 = sphi 0, %s208
      %s230 = sphi 0, %s232
      %s233 = sphi 0, %s230
      %s234 = sphi 0, %s233
      %s250 = sphi 0, %s234
    $region4: #{tpu_custom_call.1} parent=1 // loop_header_branch
      %27 = sbr.rel (%p25) target = $region8
    $region5: #{tpu_custom_call.1} parent=1 // loop_body
      %s29 = ssub.s32 %s24, 1
      %s30 = ssub.s32 %s24, 2
      %s37 = sadd.s32 1, %s32
      %p38 = scmp.ge.s32.totalorder %s37, 1
      %s39 = scalar_select %p38, 0, %s37
      %s40 = sadd.s32 1, %s31
      %s41 = scalar_select %p38, %s40, %s31
      %p42 = scmp.ge.s32.totalorder %s41, 2
      %s43 = scalar_select %p42, 0, %s41
      %s44 = ssub.s32 %s31, %s43
      %s45 = ssub.s32 %s32, %s39
      %s46 = sor.u32 %s44, %s45
      %p47 = scmp.eq.s32.totalorder %s46, 0
      %s49 = sadd.s32 %s48, 1
      %s50 = scalar_select %p47, %s48, %s49
      %p53 = pneg %p47
      %p54 = scmp.eq.s32.totalorder %s24, 1
      %p55 = por %p53, %p54
      %p56 = scmp.ne.s32.totalorder %s48, %s51
      %p57 = scmp.eq.s32.totalorder %s24, 0
      %p58 = por %p56, %p57
      %p59 = scmp.ne.s32.totalorder %s48, %s51
      %p60 = scmp.eq.s32.totalorder %s29, 1
      %p61 = por %p59, %p60
      %p62 = scmp.ne.s32.totalorder %s51, %s52
      %p63 = scmp.eq.s32.totalorder %s29, 0
      %p64 = por %p62, %p63
      %p65 = scmp.ne.s32.totalorder %s51, %s52
      %p66 = scmp.eq.s32.totalorder %s30, 1
      %p67 = por %p65, %p66
      %p69 = scmp.ne.s32.totalorder %s52, %s68
      %p70 = scmp.eq.s32.totalorder %s30, 0
      %p71 = por %p69, %p70
      %s72 = ssub.s32 %s31, %s43
      %s73 = ssub.s32 %s32, %s39
      %s74 = sor.u32 %s72, %s73
      %p75 = scmp.eq.s32.totalorder %s74, 0
      %s77 = sadd.s32 %s76, 1
      %s78 = scalar_select %p75, %s76, %s77
      %p81 = pneg %p75
      %p82 = scmp.eq.s32.totalorder %s24, 1
      %p83 = por %p81, %p82
      %p84 = scmp.ne.s32.totalorder %s76, %s79
      %p85 = scmp.eq.s32.totalorder %s24, 0
      %p86 = por %p84, %p85
      %p87 = scmp.ne.s32.totalorder %s76, %s79
      %p88 = scmp.eq.s32.totalorder %s29, 1
      %p89 = por %p87, %p88
      %p90 = scmp.ne.s32.totalorder %s79, %s80
      %p91 = scmp.eq.s32.totalorder %s29, 0
      %p92 = por %p90, %p91
      %p93 = scmp.ne.s32.totalorder %s79, %s80
      %p94 = scmp.eq.s32.totalorder %s30, 1
      %p95 = por %p93, %p94
      %p97 = scmp.ne.s32.totalorder %s80, %s96
      %p98 = scmp.eq.s32.totalorder %s30, 0
      %p99 = por %p97, %p98
      %s101 = sadd.s32 %s100, 1
      %p104 = scmp.eq.s32.totalorder %s24, 1
      %p105 = scmp.ne.s32.totalorder %s100, %s102
      %p106 = scmp.eq.s32.totalorder %s24, 0
      %p107 = por %p105, %p106
      %p108 = scmp.ne.s32.totalorder %s100, %s102
      %p109 = scmp.eq.s32.totalorder %s29, 1
      %p110 = por %p108, %p109
      %p111 = scmp.ne.s32.totalorder %s102, %s103
      %p112 = scmp.eq.s32.totalorder %s29, 0
      %p113 = por %p111, %p112
      %p114 = scmp.ne.s32.totalorder %s102, %s103
      %p115 = scmp.eq.s32.totalorder %s30, 1
      %p116 = por %p114, %p115
      %p118 = scmp.ne.s32.totalorder %s103, %s117
      %p119 = scmp.eq.s32.totalorder %s30, 0
      %p120 = por %p118, %p119
      %s122 = sadd.s32 %s121, 1
      %p125 = scmp.eq.s32.totalorder %s24, 1
      %p126 = scmp.ne.s32.totalorder %s121, %s123
      %p127 = scmp.eq.s32.totalorder %s24, 0
      %p128 = por %p126, %p127
      %p129 = scmp.ne.s32.totalorder %s121, %s123
      %p130 = scmp.eq.s32.totalorder %s29, 1
      %p131 = por %p129, %p130
      %p132 = scmp.ne.s32.totalorder %s123, %s124
      %p133 = scmp.eq.s32.totalorder %s29, 0
      %p134 = por %p132, %p133
      %p135 = scmp.ne.s32.totalorder %s123, %s124
      %p136 = scmp.eq.s32.totalorder %s30, 1
      %p137 = por %p135, %p136
      %p139 = scmp.ne.s32.totalorder %s124, %s138
      %p140 = scmp.eq.s32.totalorder %s30, 0
      %p141 = por %p139, %p140
      %s143 = sadd.s32 %s142, 1
      %p146 = scmp.eq.s32.totalorder %s24, 1
      %p147 = scmp.ne.s32.totalorder %s142, %s144
      %p148 = scmp.eq.s32.totalorder %s24, 0
      %p149 = por %p147, %p148
      %p150 = scmp.ne.s32.totalorder %s142, %s144
      %p151 = scmp.eq.s32.totalorder %s29, 1
      %p152 = por %p150, %p151
      %p153 = scmp.ne.s32.totalorder %s144, %s145
      %p154 = scmp.eq.s32.totalorder %s29, 0
      %p155 = por %p153, %p154
      %p156 = scmp.ne.s32.totalorder %s144, %s145
      %p157 = scmp.eq.s32.totalorder %s30, 1
      %p158 = por %p156, %p157
      %p160 = scmp.ne.s32.totalorder %s145, %s159
      %p161 = scmp.eq.s32.totalorder %s30, 0
      %p162 = por %p160, %p161
      %s164 = sadd.s32 %s163, 1
      %p167 = scmp.eq.s32.totalorder %s24, 1
      %p168 = scmp.ne.s32.totalorder %s163, %s165
      %p169 = scmp.eq.s32.totalorder %s24, 0
      %p170 = por %p168, %p169
      %p171 = scmp.ne.s32.totalorder %s163, %s165
      %p172 = scmp.eq.s32.totalorder %s29, 1
      %p173 = por %p171, %p172
      %p174 = scmp.ne.s32.totalorder %s165, %s166
      %p175 = scmp.eq.s32.totalorder %s29, 0
      %p176 = por %p174, %p175
      %p177 = scmp.ne.s32.totalorder %s165, %s166
      %p178 = scmp.eq.s32.totalorder %s30, 1
      %p179 = por %p177, %p178
      %p181 = scmp.ne.s32.totalorder %s166, %s180
      %p182 = scmp.eq.s32.totalorder %s30, 0
      %p183 = por %p181, %p182
      %s185 = sadd.s32 %s184, 1
      %p188 = scmp.eq.s32.totalorder %s24, 1
      %p189 = scmp.ne.s32.totalorder %s184, %s186
      %p190 = scmp.eq.s32.totalorder %s24, 0
      %p191 = por %p189, %p190
      %p192 = scmp.ne.s32.totalorder %s184, %s186
      %p193 = scmp.eq.s32.totalorder %s29, 1
      %p194 = por %p192, %p193
      %p195 = scmp.ne.s32.totalorder %s186, %s187
      %p196 = scmp.eq.s32.totalorder %s29, 0
      %p197 = por %p195, %p196
      %p198 = scmp.ne.s32.totalorder %s186, %s187
      %p199 = scmp.eq.s32.totalorder %s30, 1
      %p200 = por %p198, %p199
      %p202 = scmp.ne.s32.totalorder %s187, %s201
      %p203 = scmp.eq.s32.totalorder %s30, 0
      %p204 = por %p202, %p203
      %s206 = sadd.s32 %s205, 1
      %p209 = scmp.eq.s32.totalorder %s24, 1
      %p210 = scmp.ne.s32.totalorder %s205, %s207
      %p211 = scmp.eq.s32.totalorder %s24, 0
      %p212 = por %p210, %p211
      %p213 = scmp.ne.s32.totalorder %s205, %s207
      %p214 = scmp.eq.s32.totalorder %s29, 1
      %p215 = por %p213, %p214
      %p216 = scmp.ne.s32.totalorder %s207, %s208
      %p217 = scmp.eq.s32.totalorder %s29, 0
      %p218 = por %p216, %p217
      %p219 = scmp.ne.s32.totalorder %s207, %s208
      %p220 = scmp.eq.s32.totalorder %s30, 1
      %p221 = por %p219, %p220
      %p223 = scmp.ne.s32.totalorder %s208, %s222
      %p224 = scmp.eq.s32.totalorder %s30, 0
      %p225 = por %p223, %p224
      %s226 = ssub.s32 %s31, %s43
      %s227 = ssub.s32 %s32, %s39
      %s228 = sor.u32 %s226, %s227
      %p229 = scmp.eq.s32.totalorder %s228, 0
      %s231 = sadd.s32 %s230, 1
      %s232 = scalar_select %p229, %s230, %s231
      %p235 = pneg %p229
      %p236 = scmp.eq.s32.totalorder %s24, 1
      %p237 = por %p235, %p236
      %p238 = scmp.ne.s32.totalorder %s230, %s233
      %p239 = scmp.eq.s32.totalorder %s24, 0
      %p240 = por %p238, %p239
      %p241 = scmp.ne.s32.totalorder %s230, %s233
      %p242 = scmp.eq.s32.totalorder %s29, 1
      %p243 = por %p241, %p242
      %p244 = scmp.ne.s32.totalorder %s233, %s234
      %p245 = scmp.eq.s32.totalorder %s29, 0
      %p246 = por %p244, %p245
      %p247 = scmp.ne.s32.totalorder %s233, %s234
      %p248 = scmp.eq.s32.totalorder %s30, 1
      %p249 = por %p247, %p248
      %p251 = scmp.ne.s32.totalorder %s234, %s250
      %p252 = scmp.eq.s32.totalorder %s30, 0
      %p253 = por %p251, %p252
      %p254 = scmp.le.s32.totalorder 1, %s24
      %p255 = scmp.lt.s32.totalorder %s24, 3
      %p256 = pnand %p254, %p255
      %p257 = pneg %p256
      // Predicated region
      $region9: #{tpu_custom_call.1} parent=5 // pred_check
        _
      $region10: #{tpu_custom_call.1} parent=5 // pred_check_branch
        %259 = sbr.rel (%p256) target = $region12
      $region11: #{tpu_custom_call.1} parent=5 // pred_region
        %s260 = ssub.s32 %s24, 1
        // Predicated region
        $region13: #{tpu_custom_call.1} parent=11 // pred_check
          %p261 = pneg %p113
        $region14: #{tpu_custom_call.1} parent=11 // pred_check_branch
          %263 = sbr.rel (%p261) target = $region16
        $region15: #{tpu_custom_call.1} parent=11 // pred_region
          %s265 = ssub.s32 3072, 3072
          %266 = vsyncadd [#allocation8], %s265
          %s267 = sshll.u32 [#allocation9], 4
          %s268 = int_to_ptr.vmem [resolvable:$true] %s267
          %273 = dma.hbm_to_vmem [thread:$0]  %s2, 3072, %s268, [#allocation8], 64, 64, 4
        $region16: #{tpu_custom_call.1} parent=11 // pred_fallthru
          _
        // Predicated region
        $region17: #{tpu_custom_call.1} parent=11 // pred_check
          %p274 = pneg %p134
        $region18: #{tpu_custom_call.1} parent=11 // pred_check_branch
          %276 = sbr.rel (%p274) target = $region20
        $region19: #{tpu_custom_call.1} parent=11 // pred_region
          _
        $region20: #{tpu_custom_call.1} parent=11 // pred_fallthru
          _
        // Predicated region
        $region21: #{tpu_custom_call.1} parent=11 // pred_check
          %p277 = pneg %p155
        $region22: #{tpu_custom_call.1} parent=11 // pred_check_branch
          %279 = sbr.rel (%p277) target = $region24
        $region23: #{tpu_custom_call.1} parent=11 // pred_region
          %s281 = ssub.s32 3072, 3072
          %282 = vsyncadd [#allocation11], %s281
          %s283 = sshll.u32 [#allocation10], 4
          %s284 = int_to_ptr.vmem [resolvable:$true] %s283
          %289 = dma.hbm_to_vmem [thread:$0]  %s4, 3072, %s284, [#allocation11], 64, 64, 4
        $region24: #{tpu_custom_call.1} parent=11 // pred_fallthru
          _
        // Predicated region
        $region25: #{tpu_custom_call.1} parent=11 // pred_check
          %p290 = pneg %p176
        $region26: #{tpu_custom_call.1} parent=11 // pred_check_branch
          %292 = sbr.rel (%p290) target = $region28
        $region27: #{tpu_custom_call.1} parent=11 // pred_region
          _
        $region28: #{tpu_custom_call.1} parent=11 // pred_fallthru
          _
        // Predicated region
        $region29: #{tpu_custom_call.1} parent=11 // pred_check
          %p293 = pneg %p197
        $region30: #{tpu_custom_call.1} parent=11 // pred_check_branch
          %295 = sbr.rel (%p293) target = $region32
        $region31: #{tpu_custom_call.1} parent=11 // pred_region
          %s297 = ssub.s32 1024, 1024
          %298 = vsyncadd [#allocation11], %s297
          %s299 = sshll.u32 [#allocation12], 4
          %s300 = int_to_ptr.vmem [resolvable:$true] %s299
          %305 = dma.hbm_to_vmem [thread:$0]  %s6, 1024, %s300, [#allocation11], 64, 64, 4
        $region32: #{tpu_custom_call.1} parent=11 // pred_fallthru
          _
        // Predicated region
        $region33: #{tpu_custom_call.1} parent=11 // pred_check
          %p306 = pneg %p218
        $region34: #{tpu_custom_call.1} parent=11 // pred_check_branch
          %308 = sbr.rel (%p306) target = $region36
        $region35: #{tpu_custom_call.1} parent=11 // pred_region
          _
        $region36: #{tpu_custom_call.1} parent=11 // pred_fallthru
          _
      $region12: #{tpu_custom_call.1} parent=5 // pred_fallthru
        _
      %p309 = scmp.lt.s32.totalorder %s24, 2
      // Predicated region
      $region37: #{tpu_custom_call.1} parent=5 // pred_check
        %p310 = pneg %p309
      $region38: #{tpu_custom_call.1} parent=5 // pred_check_branch
        %312 = sbr.rel (%p310) target = $region40
      $region39: #{tpu_custom_call.1} parent=5 // pred_region
        // Predicated region
        $region41: #{tpu_custom_call.1} parent=39 // pred_check
          %p313 = pneg %p58
        $region42: #{tpu_custom_call.1} parent=39 // pred_check_branch
          %315 = sbr.rel (%p313) target = $region44
        $region43: #{tpu_custom_call.1} parent=39 // pred_region
          %s316 = sand.u32 %s48, 1
          %s317 = scalar_lea.sflag [#allocation5], %s316
          %s318 = sand.u32 %s48, 1
          %s319 = smul.addr %s318, 4
          %s320 = scalar_lea.vmem [#allocation4], %s319
          %s322 = ssub.s32 64, 64
          %323 = vsyncadd %s317, %s322
          %s324 = sadd.s32 %s32, %s31
          %s325 = smul.addr %s324, 64
          %s326 = scalar_lea.hbm %s0, %s325
          %s328 = sshll.u32 %s320, 4
          %s329 = int_to_ptr.vmem [resolvable:$true] %s328
          %331 = dma.hbm_to_vmem [thread:$0]  %s326, 64, %s329, %s317
        $region44: #{tpu_custom_call.1} parent=39 // pred_fallthru
          _
        // Predicated region
        $region45: #{tpu_custom_call.1} parent=39 // pred_check
          %p332 = pneg %p86
        $region46: #{tpu_custom_call.1} parent=39 // pred_check_branch
          %334 = sbr.rel (%p332) target = $region48
        $region47: #{tpu_custom_call.1} parent=39 // pred_region
          %s335 = sand.u32 %s24, 1
          %s336 = scalar_lea.sflag [#allocation8], %s335
          %s337 = sand.u32 %s76, 1
          %s338 = smul.addr %s337, 8
          %s339 = scalar_lea.vmem [#allocation7], %s338
          %s340 = smul.u32 2, %s32
          %s342 = ssub.s32 128, 128
          %343 = vsyncadd %s336, %s342
          %s344 = smul.addr %s31, 2
          %s345 = sadd.s32 %s340, %s344
          %s346 = smul.addr %s345, 64
          %s347 = scalar_lea.hbm %s1, %s346
          %s348 = sshll.u32 %s339, 4
          %s349 = int_to_ptr.vmem [resolvable:$true] %s348
          %354 = dma.hbm_to_vmem [thread:$0]  %s347, 128, %s349, %s336, 64, 64, 4
        $region48: #{tpu_custom_call.1} parent=39 // pred_fallthru
          _
      $region40: #{tpu_custom_call.1} parent=5 // pred_fallthru
        _
      %p355 = scmp.le.s32.totalorder 1, %s24
      %p356 = scmp.lt.s32.totalorder %s24, 3
      %p357 = pnand %p355, %p356
      %p358 = pneg %p357
      // Predicated region
      $region49: #{tpu_custom_call.1} parent=5 // pred_check
        _
      $region50: #{tpu_custom_call.1} parent=5 // pred_check_branch
        %360 = sbr.rel (%p357) target = $region52
      $region51: #{tpu_custom_call.1} parent=5 // pred_region
        %s361 = ssub.s32 %s24, 1
        %s362 = sand.u32 %s51, 1
        %s363 = scalar_lea.sflag [#allocation5], %s362
        %s364 = sand.u32 %s51, 1
        %s365 = smul.addr %s364, 4
        %s366 = scalar_lea.vmem [#allocation4], %s365
        // Predicated region
        $region53: #{tpu_custom_call.1} parent=51 // pred_check
          %p367 = pneg %p64
        $region54: #{tpu_custom_call.1} parent=51 // pred_check_branch
          %369 = sbr.rel (%p367) target = $region56
        $region55: #{tpu_custom_call.1} parent=51 // pred_region
          %370 = dma.done %s363, 64
        $region56: #{tpu_custom_call.1} parent=51 // pred_fallthru
          _
        %s371 = sand.u32 %s29, 1
        %s372 = scalar_lea.sflag [#allocation8], %s371
        %s373 = sand.u32 %s79, 1
        %s374 = smul.addr %s373, 8
        %s375 = scalar_lea.vmem [#allocation7], %s374
        // Predicated region
        $region57: #{tpu_custom_call.1} parent=51 // pred_check
          %p376 = pneg %p92
        $region58: #{tpu_custom_call.1} parent=51 // pred_check_branch
          %378 = sbr.rel (%p376) target = $region60
        $region59: #{tpu_custom_call.1} parent=51 // pred_region
          %379 = dma.done %s372, 128
        $region60: #{tpu_custom_call.1} parent=51 // pred_fallthru
          _
        // Predicated region
        $region61: #{tpu_custom_call.1} parent=51 // pred_check
          %p380 = pneg %p113
        $region62: #{tpu_custom_call.1} parent=51 // pred_check_branch
          %382 = sbr.rel (%p380) target = $region64
        $region63: #{tpu_custom_call.1} parent=51 // pred_region
          %383 = dma.done [#allocation8], 3072
        $region64: #{tpu_custom_call.1} parent=51 // pred_fallthru
          _
        // Predicated region
        $region65: #{tpu_custom_call.1} parent=51 // pred_check
          %p384 = pneg %p155
        $region66: #{tpu_custom_call.1} parent=51 // pred_check_branch
          %386 = sbr.rel (%p384) target = $region68
        $region67: #{tpu_custom_call.1} parent=51 // pred_region
          %387 = dma.done [#allocation11], 3072
        $region68: #{tpu_custom_call.1} parent=51 // pred_fallthru
          _
        // Predicated region
        $region69: #{tpu_custom_call.1} parent=51 // pred_check
          %p388 = pneg %p197
        $region70: #{tpu_custom_call.1} parent=51 // pred_check_branch
          %390 = sbr.rel (%p388) target = $region72
        $region71: #{tpu_custom_call.1} parent=51 // pred_region
          %391 = dma.done [#allocation11], 1024
        $region72: #{tpu_custom_call.1} parent=51 // pred_fallthru
          _
        %s392 = sand.u32 %s51, 1
        %s393 = scalar_lea.sflag [#allocation5], %s392
        %s394 = sand.u32 %s51, 1
        %s395 = smul.addr %s394, 4
        %s396 = scalar_lea.vmem [#allocation4], %s395
        %p397 = pneg %p64
        %p398 = pneg %p61
        %s399 = sand.u32 %s29, 1
        %s400 = scalar_lea.sflag [#allocation8], %s399
        %s401 = sand.u32 %s79, 1
        %s402 = smul.addr %s401, 8
        %s403 = scalar_lea.vmem [#allocation7], %s402
        %p404 = pneg %p92
        %p405 = pneg %p89
        %p406 = pneg %p113
        %p407 = pneg %p110
        %p408 = pneg %p134
        %p409 = pneg %p131
        %p410 = pneg %p155
        %p411 = pneg %p152
        %p412 = pneg %p176
        %p413 = pneg %p173
        %p414 = pneg %p197
        %p415 = pneg %p194
        %p416 = pneg %p218
        %p417 = pneg %p215
        %p418 = pneg %p246
        %p419 = pneg %p243
        %s420 = sand.u32 %s233, 1
        %s421 = scalar_lea.sflag [#allocation6], %s420
        %s422 = sand.u32 %s233, 1
        %s423 = smul.addr %s422, 16
        %s424 = scalar_lea.vmem [#allocation13], %s423
        %s425 = smul.u32 2, %s34
        %s426 = smul.u32 2, %s34
        %v428 = vld [vmem:[%s366] sm:$0xf]
        %429 = vst [vmem:[#allocation2] sm:$0xf] %v428
        %v430 = vld [vmem:[%s375] sm:$0xf]
        %v431 = vld [vmem:[%s375 + $0x4] sm:$0x3]
        %432 = vst [vmem:[#allocation2 + $0xc] sm:$0xf] %v430
        %433 = vst [vmem:[#allocation2 + $0x18] sm:$0x3] %v431
        %v434 = vld [vmem:[%s366] sm:$0xe]
        %v436 = vrot.slane %v434, 5
        %v437 = vrot.slane %v436, 4
        %439 = vst [vmem:[#allocation2 + $0x4] sm:$0x7] %v437
        %v440 = vld [vmem:[%s375] sm:$0xf]
        %v441 = vld [vmem:[%s375 + $0x4] sm:$0x7]
        %vm444 = vcmask 1042432
        %vm445 = vcmask 1046532
        %vm446 = vmor %vm444, %vm445
        %v447 = vrot.slane %v440, 5
        %v448 = vrot.slane %v447, 4
        %v449 = vrot.slane %v441, 5
        %v450 = vsel %vm446, %v448, %v449
        %v451 = vrot.slane %v449, 4
        %455 = vst [vmem:[#allocation2 + $0x4] sm:$0x8] %v447
        %456 = vst [vmem:[#allocation2 + $0x10] sm:$0xf] %v450
        %457 = vst [vmem:[#allocation2 + $0x1c] sm:$0x3] %v451
        %v458 = vld [vmem:[%s366] sm:$0xc]
        %v460 = vrot.slane %v458, 6
        %v461 = vrot.slane %v460, 4
        %463 = vst [vmem:[#allocation2 + $0x8] sm:$0x3] %v461
        %v464 = vld [vmem:[%s375] sm:$0xf]
        %v465 = vld [vmem:[%s375 + $0x4] sm:$0xf]
        %vm468 = vcmask 1041408
        %vm469 = vcmask 1045508
        %vm470 = vmor %vm468, %vm469
        %v471 = vrot.slane %v464, 6
        %v472 = vrot.slane %v471, 4
        %v473 = vrot.slane %v465, 6
        %v474 = vsel %vm470, %v472, %v473
        %v475 = vrot.slane %v473, 4
        %479 = vst [vmem:[#allocation2 + $0x8] sm:$0xc] %v471
        %480 = vst [vmem:[#allocation2 + $0x14] sm:$0xf] %v474
        %481 = vst [vmem:[#allocation2 + $0x20] sm:$0x3] %v475
        %v482 = vld [vmem:[#allocation2] sm:$0xff]
        %v483 = vld [vmem:[#allocation2 + $0x8] sm:$0xf]
        %v484 = vld [vmem:[#allocation2 + $0xc] sm:$0xff]
        %v485 = vld [vmem:[#allocation2 + $0x14] sm:$0xf]
        %v486 = vld [vmem:[#allocation2 + $0x18] sm:$0x33]
        %v487 = vld [vmem:[#allocation2 + $0x20] sm:$0x3]
        %v488 = vld [vmem:[#allocation9] sm:$0xf]
        %v489 = vld [vmem:[#allocation9 + $0x4] sm:$0xf]
        %v490 = vld [vmem:[#allocation9 + $0x8] sm:$0xf]
        %v491 = vld [vmem:[#allocation9 + $0xc] sm:$0xf]
        %v492 = vld [vmem:[#allocation9 + $0x10] sm:$0xf]
        %v493 = vld [vmem:[#allocation9 + $0x14] sm:$0xf]
        %v494 = vld [vmem:[#allocation9 + $0x18] sm:$0xf]
        %v495 = vld [vmem:[#allocation9 + $0x1c] sm:$0xf]
        %v496 = vld [vmem:[#allocation9 + $0x20] sm:$0xf]
        %v497 = vld [vmem:[#allocation9 + $0x24] sm:$0xf]
        %v498 = vld [vmem:[#allocation9 + $0x28] sm:$0xf]
        %v499 = vld [vmem:[#allocation9 + $0x2c] sm:$0xf]
        %v500 = vld [vmem:[#allocation9 + $0x30] sm:$0xf]
        %v501 = vld [vmem:[#allocation9 + $0x34] sm:$0xf]
        %v502 = vld [vmem:[#allocation9 + $0x38] sm:$0xf]
        %v503 = vld [vmem:[#allocation9 + $0x3c] sm:$0xf]
        %v504 = vld [vmem:[#allocation9 + $0x40] sm:$0xf]
        %v505 = vld [vmem:[#allocation9 + $0x44] sm:$0xf]
        %v506 = vld [vmem:[#allocation9 + $0x48] sm:$0xf]
        %v507 = vld [vmem:[#allocation9 + $0x4c] sm:$0xf]
        %v508 = vld [vmem:[#allocation9 + $0x50] sm:$0xf]
        %v509 = vld [vmem:[#allocation9 + $0x54] sm:$0xf]
        %v510 = vld [vmem:[#allocation9 + $0x58] sm:$0xf]
        %v511 = vld [vmem:[#allocation9 + $0x5c] sm:$0xf]
        %v512 = vld [vmem:[#allocation9 + $0x60] sm:$0xf]
        %v513 = vld [vmem:[#allocation9 + $0x64] sm:$0xf]
        %v514 = vld [vmem:[#allocation9 + $0x68] sm:$0xf]
        %v515 = vld [vmem:[#allocation9 + $0x6c] sm:$0xf]
        %v516 = vld [vmem:[#allocation9 + $0x70] sm:$0xf]
        %v517 = vld [vmem:[#allocation9 + $0x74] sm:$0xf]
        %v518 = vld [vmem:[#allocation9 + $0x78] sm:$0xf]
        %v519 = vld [vmem:[#allocation9 + $0x7c] sm:$0xf]
        %v520 = vld [vmem:[#allocation9 + $0x80] sm:$0xf]
        %v521 = vld [vmem:[#allocation9 + $0x84] sm:$0xf]
        %v522 = vld [vmem:[#allocation9 + $0x88] sm:$0xf]
        %v523 = vld [vmem:[#allocation9 + $0x8c] sm:$0xf]
        %v524 = vld [vmem:[#allocation9 + $0x90] sm:$0xf]
        %v525 = vld [vmem:[#allocation9 + $0x94] sm:$0xf]
        %v526 = vld [vmem:[#allocation9 + $0x98] sm:$0xf]
        %v527 = vld [vmem:[#allocation9 + $0x9c] sm:$0xf]
        %v528 = vld [vmem:[#allocation9 + $0xa0] sm:$0xf]
        %v529 = vld [vmem:[#allocation9 + $0xa4] sm:$0xf]
        %v530 = vld [vmem:[#allocation9 + $0xa8] sm:$0xf]
        %v531 = vld [vmem:[#allocation9 + $0xac] sm:$0xf]
        %v532 = vld [vmem:[#allocation9 + $0xb0] sm:$0xf]
        %v533 = vld [vmem:[#allocation9 + $0xb4] sm:$0xf]
        %v534 = vld [vmem:[#allocation9 + $0xb8] sm:$0xf]
        %v535 = vld [vmem:[#allocation9 + $0xbc] sm:$0xf]
        %v536 = vld [vmem:[%s3] sm:$0x1]
        %v538 = vlaneseq
        %v539 = vshrl.u32 %v538, 7
        %v540 = vsub.s32 0, %v539
        %v541 = vrot.slane %v536, %v540
        %v549 = vunpack.c.l.b16 %v482
        %v550 = vunpack.c.h.b16 %v482
        %v551 = vunpack.c.l.b16 %v483
        %v552 = vunpack.c.l.b16 %v484
        %v553 = vunpack.c.h.b16 %v484
        %v554 = vunpack.c.l.b16 %v485
        %v555 = vunpack.c.l.b16 %v486
        %v556 = vunpack.c.h.b16 %v486
        %v557 = vunpack.c.l.b16 %v487
        %v558 = vpack.c.b16 %v552, %v549
        %v559 = vpack.c.b16 %v553, %v550
        %v560 = vpack.c.b16 %v554, %v551
        %v561 = vpack.c.b16 %v555, %v555
        %v562 = vpack.c.b16 %v556, %v556
        %v563 = vpack.c.b16 %v557, %v557
        %v618 = vunpack.c.l.b16 %v488
        %v619 = vunpack.c.l.b16 %v489
        %v620 = vunpack.c.l.b16 %v490
        %v621 = vunpack.c.l.b16 %v491
        %v622 = vunpack.c.l.b16 %v492
        %v623 = vunpack.c.l.b16 %v493
        %v624 = vunpack.c.l.b16 %v494
        %v625 = vunpack.c.l.b16 %v495
        %v626 = vunpack.c.l.b16 %v496
        %v627 = vunpack.c.l.b16 %v497
        %v628 = vunpack.c.l.b16 %v498
        %v629 = vunpack.c.l.b16 %v499
        %v630 = vunpack.c.l.b16 %v500
        %v631 = vunpack.c.l.b16 %v501
        %v632 = vunpack.c.l.b16 %v502
        %v633 = vunpack.c.l.b16 %v503
        %v634 = vunpack.c.l.b16 %v504
        %v635 = vunpack.c.l.b16 %v505
        %v636 = vunpack.c.l.b16 %v506
        %v637 = vunpack.c.l.b16 %v507
        %v638 = vunpack.c.l.b16 %v508
        %v639 = vunpack.c.l.b16 %v509
        %v640 = vunpack.c.l.b16 %v510
        %v641 = vunpack.c.l.b16 %v511
        %v642 = vunpack.c.l.b16 %v512
        %v643 = vunpack.c.l.b16 %v513
        %v644 = vunpack.c.l.b16 %v514
        %v645 = vunpack.c.l.b16 %v515
        %v646 = vunpack.c.l.b16 %v516
        %v647 = vunpack.c.l.b16 %v517
        %v648 = vunpack.c.l.b16 %v518
        %v649 = vunpack.c.l.b16 %v519
        %v650 = vunpack.c.l.b16 %v520
        %v651 = vunpack.c.l.b16 %v521
        %v652 = vunpack.c.l.b16 %v522
        %v653 = vunpack.c.l.b16 %v523
        %v654 = vunpack.c.l.b16 %v524
        %v655 = vunpack.c.l.b16 %v525
        %v656 = vunpack.c.l.b16 %v526
        %v657 = vunpack.c.l.b16 %v527
        %v658 = vunpack.c.l.b16 %v528
        %v659 = vunpack.c.l.b16 %v529
        %v660 = vunpack.c.l.b16 %v530
        %v661 = vunpack.c.l.b16 %v531
        %v662 = vunpack.c.l.b16 %v532
        %v663 = vunpack.c.l.b16 %v533
        %v664 = vunpack.c.l.b16 %v534
        %v665 = vunpack.c.l.b16 %v535
        %v666 = vpack.c.b16 %v619, %v618
        %v667 = vpack.c.b16 %v621, %v620
        %v668 = vpack.c.b16 %v623, %v622
        %v669 = vpack.c.b16 %v625, %v624
        %v670 = vpack.c.b16 %v627, %v626
        %v671 = vpack.c.b16 %v629, %v628
        %v672 = vpack.c.b16 %v631, %v630
        %v673 = vpack.c.b16 %v633, %v632
        %v674 = vpack.c.b16 %v635, %v634
        %v675 = vpack.c.b16 %v637, %v636
        %v676 = vpack.c.b16 %v639, %v638
        %v677 = vpack.c.b16 %v641, %v640
        %v678 = vpack.c.b16 %v643, %v642
        %v679 = vpack.c.b16 %v645, %v644
        %v680 = vpack.c.b16 %v647, %v646
        %v681 = vpack.c.b16 %v649, %v648
        %v682 = vpack.c.b16 %v651, %v650
        %v683 = vpack.c.b16 %v653, %v652
        %v684 = vpack.c.b16 %v655, %v654
        %v685 = vpack.c.b16 %v657, %v656
        %v686 = vpack.c.b16 %v659, %v658
        %v687 = vpack.c.b16 %v661, %v660
        %v688 = vpack.c.b16 %v663, %v662
        %v689 = vpack.c.b16 %v665, %v664
        %714 = vmatprep.subr.bf16.mxu0 0
        %715 = vmatpush1.bf16.msra.mxu0 %v673
        %716 = vmatprep.subr.bf16.mxu0 0
        %717 = vmatpush1.bf16.msra.mxu0 %v672
        %718 = vmatprep.subr.bf16.mxu0 0
        %719 = vmatpush1.bf16.msra.mxu0 %v671
        %720 = vmatprep.subr.bf16.mxu0 0
        %721 = vmatpush1.bf16.msra.mxu0 %v670
        %722 = vmatprep.subr.bf16.mxu0 0
        %723 = vmatpush1.bf16.msra.mxu0 %v669
        %724 = vmatprep.subr.bf16.mxu0 0
        %725 = vmatpush1.bf16.msra.mxu0 %v668
        %726 = vmatprep.subr.bf16.mxu0 0
        %727 = vmatpush1.bf16.msra.mxu0 %v667
        %728 = vmatprep.subr.bf16.mxu0 0
        %729 = vmatpush1.bf16.msra.mxu0 %v666
        %730 = vmatprep.subr.bf16.mxu0 0
        %731 = vmatpush2.bf16.msra.mxu0 %v681
        %732 = vmatprep.subr.bf16.mxu0 0
        %733 = vmatpush2.bf16.msra.mxu0 %v680
        %734 = vmatprep.subr.bf16.mxu0 0
        %735 = vmatpush2.bf16.msra.mxu0 %v679
        %736 = vmatprep.subr.bf16.mxu0 0
        %737 = vmatpush2.bf16.msra.mxu0 %v678
        %738 = vmatprep.subr.bf16.mxu0 0
        %739 = vmatpush2.bf16.msra.mxu0 %v677
        %740 = vmatprep.subr.bf16.mxu0 0
        %741 = vmatpush2.bf16.msra.mxu0 %v676
        %742 = vmatprep.subr.bf16.mxu0 0
        %743 = vmatpush2.bf16.msra.mxu0 %v675
        %744 = vmatprep.subr.bf16.mxu0 0
        %745 = vmatpush2.bf16.msra.mxu0 %v674
        %746 = vmatprep.mubr.bf16.mxu0 %v559
        %747 = vmatmul.mubr.bf16.gmra.mxu0 %v558
        %v748 = vpop.f32.mrf.mxu0
        %v749 = vadd.f32 %v541, %v748
        %v750 = vpop.f32.mrf.mxu0
        %v751 = vpop.f32.mrf.mxu0
        %v752 = vadd.f32 %v541, %v751
        %v753 = vpop.f32.mrf.mxu0
        %754 = vmatprep.mubr.bf16.mxu0 %v562
        %755 = vmatmul.mubr.bf16.gmra.mxu0 %v561
        %v756 = vpop.f32.mrf.mxu0
        %v757 = vadd.f32 %v541, %v756
        %v758 = vpop.f32.mrf.mxu0
        %v759 = vpop.f32.mrf.mxu0
        %v760 = vpop.f32.mrf.mxu0
        %761 = vdwg.mxu0
        %762 = vmatprep.subr.bf16.mxu0 0
        %763 = vmatpush1.bf16.msra.mxu0 %v689
        %764 = vmatprep.subr.bf16.mxu0 0
        %765 = vmatpush1.bf16.msra.mxu0 %v688
        %766 = vmatprep.subr.bf16.mxu0 0
        %767 = vmatpush1.bf16.msra.mxu0 %v687
        %768 = vmatprep.subr.bf16.mxu0 0
        %769 = vmatpush1.bf16.msra.mxu0 %v686
        %770 = vmatprep.subr.bf16.mxu0 0
        %771 = vmatpush1.bf16.msra.mxu0 %v685
        %772 = vmatprep.subr.bf16.mxu0 0
        %773 = vmatpush1.bf16.msra.mxu0 %v684
        %774 = vmatprep.subr.bf16.mxu0 0
        %775 = vmatpush1.bf16.msra.mxu0 %v683
        %776 = vmatprep.subr.bf16.mxu0 0
        %777 = vmatpush1.bf16.msra.mxu0 %v682
        %778 = vmatprep.subr.bf16.mxu0 0
        %779 = vmatpush2.bf16.msra.mxu0 0
        %780 = vmatprep.subr.bf16.mxu0 0
        %781 = vmatpush2.bf16.msra.mxu0 0
        %782 = vmatprep.subr.bf16.mxu0 0
        %783 = vmatpush2.bf16.msra.mxu0 0
        %784 = vmatprep.subr.bf16.mxu0 0
        %785 = vmatpush2.bf16.msra.mxu0 0
        %786 = vmatprep.subr.bf16.mxu0 0
        %787 = vmatpush2.bf16.msra.mxu0 0
        %788 = vmatprep.subr.bf16.mxu0 0
        %789 = vmatpush2.bf16.msra.mxu0 0
        %790 = vmatprep.subr.bf16.mxu0 0
        %791 = vmatpush2.bf16.msra.mxu0 0
        %792 = vmatprep.subr.bf16.mxu0 0
        %793 = vmatpush2.bf16.msra.mxu0 0
        %794 = vmatprep.mubr.bf16.mxu0 0
        %795 = vmatmul.mubr.bf16.gmra.mxu0 %v560
        %v796 = vpop.f32.mrf.mxu0
        %v797 = vadd.f32 %v749, %v796
        %v798 = vpop.f32.mrf.mxu0
        %v799 = vpop.f32.mrf.mxu0
        %v800 = vadd.f32 %v752, %v799
        %v801 = vpop.f32.mrf.mxu0
        %802 = vmatprep.mubr.bf16.mxu0 0
        %803 = vmatmul.mubr.bf16.gmra.mxu0 %v563
        %v804 = vpop.f32.mrf.mxu0
        %v805 = vadd.f32 %v757, %v804
        %v806 = vpop.f32.mrf.mxu0
        %v807 = vpop.f32.mrf.mxu0
        %v808 = vpop.f32.mrf.mxu0
        %809 = vdwg.mxu0
        %v810 = vmax.f32 %v797, 0.0
        %v811 = vmax.f32 %v800, 0.0
        %v812 = vmax.f32 %v805, 0.0
        %v813 = vlaneseq
        %v814 = vshrl.u32 %v813, 7
        %v815 = vadd.s32 %v814, 8
        %v816 = vadd.s32 %v814, 16
        %p817 = scmp.gt.s32.totalorder %s34, 0
        %vm818 = vcmp.ge.s32.totalorder %v814, 4
        %vm819 = vcmp.ge.s32.totalorder %v815, 4
        %vm820 = vcmp.ge.s32.totalorder %v816, 4
        %s821 = scalar_select %p817, 1, 0
        %v822 = vstv %s821
        %vm823 = vcmp.eq.s32.totalorder %v822, 1
        %vm824 = vmor %vm823, %vm818
        %vm825 = vmor %vm823, %vm819
        %vm826 = vmor %vm823, %vm820
        %v827 = vsel %vm824, %v810, 0.0
        %v828 = vsel %vm825, %v811, 0.0
        %v829 = vsel %vm826, %v812, 0.0
        %v830 = vpack.c.bf16 %v828, %v827
        %v831 = vpack.c.bf16 %v829, %v829
        %v833 = vunpack.c.l.b16 %v830
        %v834 = vunpack.c.h.b16 %v830
        %v835 = vpack.c.b16 %v833, %v833
        %v836 = vpack.c.b16 %v834, %v834
        %839 = vst [vmem:[#allocation3] sm:$0xf] %v835
        %840 = vst [vmem:[#allocation3 + $0xc] sm:$0xf] %v836
        %v842 = vunpack.c.l.b16 %v831
        %v843 = vpack.c.b16 %v842, %v842
        %v844 = vrot.slane %v835, 5
        %v845 = vrot.slane %v844, 4
        %v846 = vrot.slane %v836, 5
        %v847 = vsel %vm446, %v845, %v846
        %v848 = vrot.slane %v846, 4
        %v849 = vrot.slane %v843, 5
        %v850 = vsel %vm446, %v848, %v849
        %853 = vst [vmem:[#allocation3 + $0x4] sm:$0xf] %v847
        %854 = vst [vmem:[#allocation3 + $0x10] sm:$0xf] %v850
        %v855 = vrot.slane %v835, 6
        %v856 = vrot.slane %v855, 4
        %v857 = vrot.slane %v836, 6
        %v858 = vsel %vm470, %v856, %v857
        %v859 = vrot.slane %v857, 4
        %v860 = vrot.slane %v843, 6
        %v861 = vsel %vm470, %v859, %v860
        %864 = vst [vmem:[#allocation3 + $0x8] sm:$0xf] %v858
        %865 = vst [vmem:[#allocation3 + $0x14] sm:$0xf] %v861
        %v866 = vld [vmem:[#allocation3] sm:$0xff]
        %v867 = vld [vmem:[#allocation3 + $0x8] sm:$0xf]
        %v868 = vld [vmem:[#allocation3 + $0xc] sm:$0xff]
        %v869 = vld [vmem:[#allocation3 + $0x14] sm:$0xf]
        %v870 = vld [vmem:[#allocation10] sm:$0xf]
        %v871 = vld [vmem:[#allocation10 + $0x4] sm:$0xf]
        %v872 = vld [vmem:[#allocation10 + $0x8] sm:$0xf]
        %v873 = vld [vmem:[#allocation10 + $0xc] sm:$0xf]
        %v874 = vld [vmem:[#allocation10 + $0x10] sm:$0xf]
        %v875 = vld [vmem:[#allocation10 + $0x14] sm:$0xf]
        %v876 = vld [vmem:[#allocation10 + $0x18] sm:$0xf]
        %v877 = vld [vmem:[#allocation10 + $0x1c] sm:$0xf]
        %v878 = vld [vmem:[#allocation10 + $0x20] sm:$0xf]
        %v879 = vld [vmem:[#allocation10 + $0x24] sm:$0xf]
        %v880 = vld [vmem:[#allocation10 + $0x28] sm:$0xf]
        %v881 = vld [vmem:[#allocation10 + $0x2c] sm:$0xf]
        %v882 = vld [vmem:[#allocation10 + $0x30] sm:$0xf]
        %v883 = vld [vmem:[#allocation10 + $0x34] sm:$0xf]
        %v884 = vld [vmem:[#allocation10 + $0x38] sm:$0xf]
        %v885 = vld [vmem:[#allocation10 + $0x3c] sm:$0xf]
        %v886 = vld [vmem:[#allocation10 + $0x40] sm:$0xf]
        %v887 = vld [vmem:[#allocation10 + $0x44] sm:$0xf]
        %v888 = vld [vmem:[#allocation10 + $0x48] sm:$0xf]
        %v889 = vld [vmem:[#allocation10 + $0x4c] sm:$0xf]
        %v890 = vld [vmem:[#allocation10 + $0x50] sm:$0xf]
        %v891 = vld [vmem:[#allocation10 + $0x54] sm:$0xf]
        %v892 = vld [vmem:[#allocation10 + $0x58] sm:$0xf]
        %v893 = vld [vmem:[#allocation10 + $0x5c] sm:$0xf]
        %v894 = vld [vmem:[#allocation10 + $0x60] sm:$0xf]
        %v895 = vld [vmem:[#allocation10 + $0x64] sm:$0xf]
        %v896 = vld [vmem:[#allocation10 + $0x68] sm:$0xf]
        %v897 = vld [vmem:[#allocation10 + $0x6c] sm:$0xf]
        %v898 = vld [vmem:[#allocation10 + $0x70] sm:$0xf]
        %v899 = vld [vmem:[#allocation10 + $0x74] sm:$0xf]
        %v900 = vld [vmem:[#allocation10 + $0x78] sm:$0xf]
        %v901 = vld [vmem:[#allocation10 + $0x7c] sm:$0xf]
        %v902 = vld [vmem:[#allocation10 + $0x80] sm:$0xf]
        %v903 = vld [vmem:[#allocation10 + $0x84] sm:$0xf]
        %v904 = vld [vmem:[#allocation10 + $0x88] sm:$0xf]
        %v905 = vld [vmem:[#allocation10 + $0x8c] sm:$0xf]
        %v906 = vld [vmem:[#allocation10 + $0x90] sm:$0xf]
        %v907 = vld [vmem:[#allocation10 + $0x94] sm:$0xf]
        %v908 = vld [vmem:[#allocation10 + $0x98] sm:$0xf]
        %v909 = vld [vmem:[#allocation10 + $0x9c] sm:$0xf]
        %v910 = vld [vmem:[#allocation10 + $0xa0] sm:$0xf]
        %v911 = vld [vmem:[#allocation10 + $0xa4] sm:$0xf]
        %v912 = vld [vmem:[#allocation10 + $0xa8] sm:$0xf]
        %v913 = vld [vmem:[#allocation10 + $0xac] sm:$0xf]
        %v914 = vld [vmem:[#allocation10 + $0xb0] sm:$0xf]
        %v915 = vld [vmem:[#allocation10 + $0xb4] sm:$0xf]
        %v916 = vld [vmem:[#allocation10 + $0xb8] sm:$0xf]
        %v917 = vld [vmem:[#allocation10 + $0xbc] sm:$0xf]
        %v918 = vld [vmem:[%s5] sm:$0x1]
        %v920 = vlaneseq
        %v921 = vshrl.u32 %v920, 7
        %v922 = vsub.s32 0, %v921
        %v923 = vrot.slane %v918, %v922
        %v929 = vunpack.c.l.b16 %v866
        %v930 = vunpack.c.h.b16 %v866
        %v931 = vunpack.c.l.b16 %v867
        %v932 = vunpack.c.l.b16 %v868
        %v933 = vunpack.c.h.b16 %v868
        %v934 = vunpack.c.l.b16 %v869
        %v935 = vpack.c.b16 %v932, %v929
        %v936 = vpack.c.b16 %v933, %v930
        %v937 = vpack.c.b16 %v934, %v931
        %v989 = vunpack.c.l.b16 %v870
        %v990 = vunpack.c.l.b16 %v871
        %v991 = vunpack.c.l.b16 %v872
        %v992 = vunpack.c.l.b16 %v873
        %v993 = vunpack.c.l.b16 %v874
        %v994 = vunpack.c.l.b16 %v875
        %v995 = vunpack.c.l.b16 %v876
        %v996 = vunpack.c.l.b16 %v877
        %v997 = vunpack.c.l.b16 %v878
        %v998 = vunpack.c.l.b16 %v879
        %v999 = vunpack.c.l.b16 %v880
        %v1000 = vunpack.c.l.b16 %v881
        %v1001 = vunpack.c.l.b16 %v882
        %v1002 = vunpack.c.l.b16 %v883
        %v1003 = vunpack.c.l.b16 %v884
        %v1004 = vunpack.c.l.b16 %v885
        %v1005 = vunpack.c.l.b16 %v886
        %v1006 = vunpack.c.l.b16 %v887
        %v1007 = vunpack.c.l.b16 %v888
        %v1008 = vunpack.c.l.b16 %v889
        %v1009 = vunpack.c.l.b16 %v890
        %v1010 = vunpack.c.l.b16 %v891
        %v1011 = vunpack.c.l.b16 %v892
        %v1012 = vunpack.c.l.b16 %v893
        %v1013 = vunpack.c.l.b16 %v894
        %v1014 = vunpack.c.l.b16 %v895
        %v1015 = vunpack.c.l.b16 %v896
        %v1016 = vunpack.c.l.b16 %v897
        %v1017 = vunpack.c.l.b16 %v898
        %v1018 = vunpack.c.l.b16 %v899
        %v1019 = vunpack.c.l.b16 %v900
        %v1020 = vunpack.c.l.b16 %v901
        %v1021 = vunpack.c.l.b16 %v902
        %v1022 = vunpack.c.l.b16 %v903
        %v1023 = vunpack.c.l.b16 %v904
        %v1024 = vunpack.c.l.b16 %v905
        %v1025 = vunpack.c.l.b16 %v906
        %v1026 = vunpack.c.l.b16 %v907
        %v1027 = vunpack.c.l.b16 %v908
        %v1028 = vunpack.c.l.b16 %v909
        %v1029 = vunpack.c.l.b16 %v910
        %v1030 = vunpack.c.l.b16 %v911
        %v1031 = vunpack.c.l.b16 %v912
        %v1032 = vunpack.c.l.b16 %v913
        %v1033 = vunpack.c.l.b16 %v914
        %v1034 = vunpack.c.l.b16 %v915
        %v1035 = vunpack.c.l.b16 %v916
        %v1036 = vunpack.c.l.b16 %v917
        %v1037 = vpack.c.b16 %v990, %v989
        %v1038 = vpack.c.b16 %v992, %v991
        %v1039 = vpack.c.b16 %v994, %v993
        %v1040 = vpack.c.b16 %v996, %v995
        %v1041 = vpack.c.b16 %v998, %v997
        %v1042 = vpack.c.b16 %v1000, %v999
        %v1043 = vpack.c.b16 %v1002, %v1001
        %v1044 = vpack.c.b16 %v1004, %v1003
        %v1045 = vpack.c.b16 %v1006, %v1005
        %v1046 = vpack.c.b16 %v1008, %v1007
        %v1047 = vpack.c.b16 %v1010, %v1009
        %v1048 = vpack.c.b16 %v1012, %v1011
        %v1049 = vpack.c.b16 %v1014, %v1013
        %v1050 = vpack.c.b16 %v1016, %v1015
        %v1051 = vpack.c.b16 %v1018, %v1017
        %v1052 = vpack.c.b16 %v1020, %v1019
        %v1053 = vpack.c.b16 %v1022, %v1021
        %v1054 = vpack.c.b16 %v1024, %v1023
        %v1055 = vpack.c.b16 %v1026, %v1025
        %v1056 = vpack.c.b16 %v1028, %v1027
        %v1057 = vpack.c.b16 %v1030, %v1029
        %v1058 = vpack.c.b16 %v1032, %v1031
        %v1059 = vpack.c.b16 %v1034, %v1033
        %v1060 = vpack.c.b16 %v1036, %v1035
        %1085 = vmatprep.subr.bf16.mxu0 0
        %1086 = vmatpush1.bf16.msra.mxu0 %v1044
        %1087 = vmatprep.subr.bf16.mxu0 0
        %1088 = vmatpush1.bf16.msra.mxu0 %v1043
        %1089 = vmatprep.subr.bf16.mxu0 0
        %1090 = vmatpush1.bf16.msra.mxu0 %v1042
        %1091 = vmatprep.subr.bf16.mxu0 0
        %1092 = vmatpush1.bf16.msra.mxu0 %v1041
        %1093 = vmatprep.subr.bf16.mxu0 0
        %1094 = vmatpush1.bf16.msra.mxu0 %v1040
        %1095 = vmatprep.subr.bf16.mxu0 0
        %1096 = vmatpush1.bf16.msra.mxu0 %v1039
        %1097 = vmatprep.subr.bf16.mxu0 0
        %1098 = vmatpush1.bf16.msra.mxu0 %v1038
        %1099 = vmatprep.subr.bf16.mxu0 0
        %1100 = vmatpush1.bf16.msra.mxu0 %v1037
        %1101 = vmatprep.subr.bf16.mxu0 0
        %1102 = vmatpush2.bf16.msra.mxu0 %v1052
        %1103 = vmatprep.subr.bf16.mxu0 0
        %1104 = vmatpush2.bf16.msra.mxu0 %v1051
        %1105 = vmatprep.subr.bf16.mxu0 0
        %1106 = vmatpush2.bf16.msra.mxu0 %v1050
        %1107 = vmatprep.subr.bf16.mxu0 0
        %1108 = vmatpush2.bf16.msra.mxu0 %v1049
        %1109 = vmatprep.subr.bf16.mxu0 0
        %1110 = vmatpush2.bf16.msra.mxu0 %v1048
        %1111 = vmatprep.subr.bf16.mxu0 0
        %1112 = vmatpush2.bf16.msra.mxu0 %v1047
        %1113 = vmatprep.subr.bf16.mxu0 0
        %1114 = vmatpush2.bf16.msra.mxu0 %v1046
        %1115 = vmatprep.subr.bf16.mxu0 0
        %1116 = vmatpush2.bf16.msra.mxu0 %v1045
        %1117 = vmatprep.mubr.bf16.mxu0 %v936
        %1118 = vmatmul.mubr.bf16.gmra.mxu0 %v935
        %v1119 = vpop.f32.mrf.mxu0
        %v1120 = vadd.f32 %v923, %v1119
        %v1121 = vpop.f32.mrf.mxu0
        %v1122 = vpop.f32.mrf.mxu0
        %v1123 = vadd.f32 %v923, %v1122
        %v1124 = vpop.f32.mrf.mxu0
        %1125 = vdwg.mxu0
        %1126 = vmatprep.subr.bf16.mxu0 0
        %1127 = vmatpush1.bf16.msra.mxu0 %v1060
        %1128 = vmatprep.subr.bf16.mxu0 0
        %1129 = vmatpush1.bf16.msra.mxu0 %v1059
        %1130 = vmatprep.subr.bf16.mxu0 0
        %1131 = vmatpush1.bf16.msra.mxu0 %v1058
        %1132 = vmatprep.subr.bf16.mxu0 0
        %1133 = vmatpush1.bf16.msra.mxu0 %v1057
        %1134 = vmatprep.subr.bf16.mxu0 0
        %1135 = vmatpush1.bf16.msra.mxu0 %v1056
        %1136 = vmatprep.subr.bf16.mxu0 0
        %1137 = vmatpush1.bf16.msra.mxu0 %v1055
        %1138 = vmatprep.subr.bf16.mxu0 0
        %1139 = vmatpush1.bf16.msra.mxu0 %v1054
        %1140 = vmatprep.subr.bf16.mxu0 0
        %1141 = vmatpush1.bf16.msra.mxu0 %v1053
        %1142 = vmatprep.subr.bf16.mxu0 0
        %1143 = vmatpush2.bf16.msra.mxu0 0
        %1144 = vmatprep.subr.bf16.mxu0 0
        %1145 = vmatpush2.bf16.msra.mxu0 0
        %1146 = vmatprep.subr.bf16.mxu0 0
        %1147 = vmatpush2.bf16.msra.mxu0 0
        %1148 = vmatprep.subr.bf16.mxu0 0
        %1149 = vmatpush2.bf16.msra.mxu0 0
        %1150 = vmatprep.subr.bf16.mxu0 0
        %1151 = vmatpush2.bf16.msra.mxu0 0
        %1152 = vmatprep.subr.bf16.mxu0 0
        %1153 = vmatpush2.bf16.msra.mxu0 0
        %1154 = vmatprep.subr.bf16.mxu0 0
        %1155 = vmatpush2.bf16.msra.mxu0 0
        %1156 = vmatprep.subr.bf16.mxu0 0
        %1157 = vmatpush2.bf16.msra.mxu0 0
        %1158 = vmatprep.mubr.bf16.mxu0 0
        %1159 = vmatmul.mubr.bf16.gmra.mxu0 %v937
        %v1160 = vpop.f32.mrf.mxu0
        %v1161 = vadd.f32 %v1120, %v1160
        %v1162 = vpop.f32.mrf.mxu0
        %v1163 = vpop.f32.mrf.mxu0
        %v1164 = vadd.f32 %v1123, %v1163
        %v1165 = vpop.f32.mrf.mxu0
        %1166 = vdwg.mxu0
        %v1167 = vmax.f32 %v1161, 0.0
        %v1168 = vmax.f32 %v1164, 0.0
        %v1169 = vld [vmem:[%s375] sm:$0xf]
        %v1170 = vld [vmem:[%s375 + $0x4] sm:$0xf]
        %v1171 = vld [vmem:[#allocation12] sm:$0xf]
        %v1172 = vld [vmem:[#allocation12 + $0x4] sm:$0xf]
        %v1173 = vld [vmem:[#allocation12 + $0x8] sm:$0xf]
        %v1174 = vld [vmem:[#allocation12 + $0xc] sm:$0xf]
        %v1175 = vld [vmem:[#allocation12 + $0x10] sm:$0xf]
        %v1176 = vld [vmem:[#allocation12 + $0x14] sm:$0xf]
        %v1177 = vld [vmem:[#allocation12 + $0x18] sm:$0xf]
        %v1178 = vld [vmem:[#allocation12 + $0x1c] sm:$0xf]
        %v1179 = vld [vmem:[#allocation12 + $0x20] sm:$0xf]
        %v1180 = vld [vmem:[#allocation12 + $0x24] sm:$0xf]
        %v1181 = vld [vmem:[#allocation12 + $0x28] sm:$0xf]
        %v1182 = vld [vmem:[#allocation12 + $0x2c] sm:$0xf]
        %v1183 = vld [vmem:[#allocation12 + $0x30] sm:$0xf]
        %v1184 = vld [vmem:[#allocation12 + $0x34] sm:$0xf]
        %v1185 = vld [vmem:[#allocation12 + $0x38] sm:$0xf]
        %v1186 = vld [vmem:[#allocation12 + $0x3c] sm:$0xf]
        %v1187 = vld [vmem:[%s7] sm:$0x1]
        %v1189 = vlaneseq
        %v1190 = vshrl.u32 %v1189, 7
        %v1191 = vsub.s32 0, %v1190
        %v1192 = vrot.slane %v1187, %v1191
        %v1196 = vunpack.c.l.b16 %v1169
        %v1197 = vunpack.c.l.b16 %v1170
        %v1198 = vpack.c.b16 %v1197, %v1196
        %v1216 = vunpack.c.l.b16 %v1171
        %v1217 = vunpack.c.l.b16 %v1172
        %v1218 = vunpack.c.l.b16 %v1173
        %v1219 = vunpack.c.l.b16 %v1174
        %v1220 = vunpack.c.l.b16 %v1175
        %v1221 = vunpack.c.l.b16 %v1176
        %v1222 = vunpack.c.l.b16 %v1177
        %v1223 = vunpack.c.l.b16 %v1178
        %v1224 = vunpack.c.l.b16 %v1179
        %v1225 = vunpack.c.l.b16 %v1180
        %v1226 = vunpack.c.l.b16 %v1181
        %v1227 = vunpack.c.l.b16 %v1182
        %v1228 = vunpack.c.l.b16 %v1183
        %v1229 = vunpack.c.l.b16 %v1184
        %v1230 = vunpack.c.l.b16 %v1185
        %v1231 = vunpack.c.l.b16 %v1186
        %v1232 = vpack.c.b16 %v1217, %v1216
        %v1233 = vpack.c.b16 %v1219, %v1218
        %v1234 = vpack.c.b16 %v1221, %v1220
        %v1235 = vpack.c.b16 %v1223, %v1222
        %v1236 = vpack.c.b16 %v1225, %v1224
        %v1237 = vpack.c.b16 %v1227, %v1226
        %v1238 = vpack.c.b16 %v1229, %v1228
        %v1239 = vpack.c.b16 %v1231, %v1230
        %1248 = vmatprep.subr.bf16.mxu0 0
        %1249 = vmatpush1.bf16.msra.mxu0 %v1239
        %1250 = vmatprep.subr.bf16.mxu0 0
        %1251 = vmatpush1.bf16.msra.mxu0 %v1238
        %1252 = vmatprep.subr.bf16.mxu0 0
        %1253 = vmatpush1.bf16.msra.mxu0 %v1237
        %1254 = vmatprep.subr.bf16.mxu0 0
        %1255 = vmatpush1.bf16.msra.mxu0 %v1236
        %1256 = vmatprep.subr.bf16.mxu0 0
        %1257 = vmatpush1.bf16.msra.mxu0 %v1235
        %1258 = vmatprep.subr.bf16.mxu0 0
        %1259 = vmatpush1.bf16.msra.mxu0 %v1234
        %1260 = vmatprep.subr.bf16.mxu0 0
        %1261 = vmatpush1.bf16.msra.mxu0 %v1233
        %1262 = vmatprep.subr.bf16.mxu0 0
        %1263 = vmatpush1.bf16.msra.mxu0 %v1232
        %1264 = vmatprep.subr.bf16.mxu0 0
        %1265 = vmatpush2.bf16.msra.mxu0 0
        %1266 = vmatprep.subr.bf16.mxu0 0
        %1267 = vmatpush2.bf16.msra.mxu0 0
        %1268 = vmatprep.subr.bf16.mxu0 0
        %1269 = vmatpush2.bf16.msra.mxu0 0
        %1270 = vmatprep.subr.bf16.mxu0 0
        %1271 = vmatpush2.bf16.msra.mxu0 0
        %1272 = vmatprep.subr.bf16.mxu0 0
        %1273 = vmatpush2.bf16.msra.mxu0 0
        %1274 = vmatprep.subr.bf16.mxu0 0
        %1275 = vmatpush2.bf16.msra.mxu0 0
        %1276 = vmatprep.subr.bf16.mxu0 0
        %1277 = vmatpush2.bf16.msra.mxu0 0
        %1278 = vmatprep.subr.bf16.mxu0 0
        %1279 = vmatpush2.bf16.msra.mxu0 0
        %1280 = vmatprep.mubr.bf16.mxu0 0
        %1281 = vmatmul.mubr.bf16.gmra.mxu0 %v1198
        %v1282 = vpop.f32.mrf.mxu0
        %v1283 = vadd.f32 %v1192, %v1282
        %v1284 = vpop.f32.mrf.mxu0
        %v1285 = vpop.f32.mrf.mxu0
        %v1286 = vadd.f32 %v1192, %v1285
        %v1287 = vpop.f32.mrf.mxu0
        %1288 = vdwg.mxu0
        %v1289 = vadd.f32 %v1167, %v1283
        %v1290 = vadd.f32 %v1168, %v1286
        %v1291 = vmax.f32 %v1289, 0.0
        %v1292 = vmax.f32 %v1290, 0.0
        %1293 = vst [vmem:[%s424] sm:$0xff] %v1291
        %1294 = vst [vmem:[%s424 + $0x8] sm:$0xff] %v1292
        %s1295 = sand.u32 %s233, 1
        %s1296 = scalar_lea.sflag [#allocation6], %s1295
        %s1297 = sand.u32 %s233, 1
        %s1298 = smul.addr %s1297, 16
        %s1299 = scalar_lea.vmem [#allocation13], %s1298
        // Predicated region
        $region73: #{tpu_custom_call.1} parent=51 // pred_check
          %p1300 = pneg %p243
        $region74: #{tpu_custom_call.1} parent=51 // pred_check_branch
          %1302 = sbr.rel (%p1300) target = $region76
        $region75: #{tpu_custom_call.1} parent=51 // pred_region
          %s1303 = smul.u32 2, %s34
          %s1305 = ssub.s32 256, 256
          %1306 = vsyncadd %s1296, %s1305
          %s1307 = smul.addr %s33, 2
          %s1308 = sadd.s32 %s1303, %s1307
          %s1309 = smul.addr %s1308, 128
          %s1310 = scalar_lea.hbm %s8, %s1309
          %s1311 = sshll.u32 %s1299, 4
          %s1312 = int_to_ptr.vmem [resolvable:$true] %s1311
          %1317 = dma.vmem_to_hbm [thread:$0]  %s1312, 256, %s1310, %s1296, 128, 128, 8
        $region76: #{tpu_custom_call.1} parent=51 // pred_fallthru
          _
      $region52: #{tpu_custom_call.1} parent=5 // pred_fallthru
        _
      %p1318 = scmp.le.s32.totalorder 2, %s24
      // Predicated region
      $region77: #{tpu_custom_call.1} parent=5 // pred_check
        %p1319 = pneg %p1318
      $region78: #{tpu_custom_call.1} parent=5 // pred_check_branch
        %1321 = sbr.rel (%p1319) target = $region80
      $region79: #{tpu_custom_call.1} parent=5 // pred_region
        %s1322 = ssub.s32 %s24, 2
        // Predicated region
        $region81: #{tpu_custom_call.1} parent=79 // pred_check
          %p1323 = pneg %p249
        $region82: #{tpu_custom_call.1} parent=79 // pred_check_branch
          %1325 = sbr.rel (%p1323) target = $region84
        $region83: #{tpu_custom_call.1} parent=79 // pred_region
          %s1326 = sand.u32 %s234, 1
          %s1327 = scalar_lea.sflag [#allocation6], %s1326
          %s1328 = sand.u32 %s234, 1
          %s1329 = smul.addr %s1328, 16
          %s1330 = scalar_lea.vmem [#allocation13], %s1329
          %1331 = dma.done %s1327, 256
        $region84: #{tpu_custom_call.1} parent=79 // pred_fallthru
          _
      $region80: #{tpu_custom_call.1} parent=5 // pred_fallthru
        _
    $region6: #{tpu_custom_call.1} parent=1 // loop_footer
      %s28 = sadd.s32 1, %s24
    $region7: #{tpu_custom_call.1} parent=1 // loop_footer_branch
      %23 = sbr.rel target = $region3
    $region8: #{tpu_custom_call.1} parent=1 // loop_exit
      _
    %1332 = vsyncpa [#allocation5], 1
    %s1333 = scalar_lea.sflag [#allocation5], 1
    %1334 = vsyncpa %s1333, 1
    %1335 = vsyncpa [#allocation8], 1
    %s1336 = scalar_lea.sflag [#allocation8], 1
    %1337 = vsyncpa %s1336, 1
    %1338 = vsyncpa [#allocation11], 1
    %1339 = vsyncpa [#allocation6], 1
    %s1340 = scalar_lea.sflag [#allocation6], 1
    %1341 = vsyncpa %s1340, 1

</llo_original>
